<compile_context>
chip_gen: v7x
topology: tpu7x:2x2x1
jax: 0.10.0
libtpu: 0.0.40
codegen_flags: <defaults>
</compile_context>

<pallas_src>
import jax
import jax.numpy as jnp
from jax.experimental import pallas as pl
from jax.experimental.pallas import tpu as pltpu


def _round_up(n, m):
    return ((n + m - 1) // m) * m


def _qnn_kernel(x_ref, w_ref, s_ref, o_ref):
    # x_ref: (TILE_R, 128) lane-packed angles (Q consecutive lanes per sample)
    # w_ref: (1, 128)      RY weights tiled across lanes (lane l -> w[l % Q])
    # s_ref: (Q, 128, SPR) 0/1 deinterleave matrices (one 1.0 per column)
    # o_ref: (TILE_R, SPR) sigmoid((parity + 1)/2), SPR = 128 // Q samples/row
    q = s_ref.shape[0]

    # RY angle sum + cosine at full vreg occupancy (dominant VALU/EUP work).
    c = jnp.cos(x_ref[...] + w_ref[...])                      # (TILE_R, 128)

    # Lane compaction on the otherwise-idle MXU: plane k holds the qubit-k
    # factor of SPR samples per row, lane-dense.  Exact selection: each column
    # of s has a single 1.0 and HIGHEST precision keeps f32 through the MXU.
    planes = [
        jax.lax.dot(c, s_ref[k],
                    precision=jax.lax.Precision.HIGHEST,
                    preferred_element_type=jnp.float32)
        for k in range(q)
    ]

    # Pairwise-tree product over qubits => parity expectation <Z...Z>.
    while len(planes) > 1:
        nxt = [a * b for a, b in zip(planes[0::2], planes[1::2])]
        if len(planes) % 2:
            nxt.append(planes[-1])
        planes = nxt
    parity = planes[0]                                         # (TILE_R, SPR)

    z = (parity + 1.0) * 0.5
    # sigmoid(z) = 0.5 * (1 + tanh(z / 2)) -> a single EUP transcendental.
    o_ref[...] = (0.5 * jnp.tanh(0.5 * z) + 0.5).astype(o_ref.dtype)


def quantum_only_qnn_forward(x, weights, *, tile_rows=4096):
    """x: (B, Q) float32 angles, weights: (Q,) float32 -> (B,) float32."""
    B, Q = x.shape
    if 128 % Q != 0:
        # TODO(synk): lane-packed layout assumes Q divides 128 (true for Q=4).
        raise NotImplementedError("lane-packed kernel requires Q to divide 128")
    spr = 128 // Q                                  # samples per 128-lane row

    x = x.astype(jnp.float32)
    w = weights.astype(jnp.float32)

    # Flat, lane-packed view of the batch: free row-major reshape, no HBM pass.
    n = B * Q
    rows = _round_up(pl.cdiv(B, spr), 8)            # keep sublane dim 8-aligned
    n_pad = rows * 128
    xf = x.reshape(-1)
    if n_pad != n:
        # Ragged tail only (B not a multiple of 8*spr): small zero-pad copy.
        xf = jnp.pad(xf, (0, n_pad - n))
    x2 = xf.reshape(rows, 128)

    # Weights tiled across the 128 lanes (lane l -> w[l % Q]).
    wrow = jnp.tile(w, spr).reshape(1, 128)

    # 0/1 deinterleave matrices: sel[k, l, j] = 1  iff  l == Q*j + k.
    lane = jnp.arange(128, dtype=jnp.int32)[:, None]
    col = jnp.arange(spr, dtype=jnp.int32)[None, :]
    sel = jnp.stack(
        [(lane == Q * col + k).astype(jnp.float32) for k in range(Q)], axis=0)

    # Row-tile size: multiple of 8, big enough to amortize the ~0.35us/step
    # overhead, small enough for v7x VMEM, and >=2 tiles so both v7x
    # TensorCores get fed on the "parallel" axis.
    cap = _round_up(max(8, tile_rows), 8)
    want_two = _round_up(max(1, pl.cdiv(rows, 2)), 8)
    tile_rows = max(8, min(cap, want_two, rows))
    grid = (pl.cdiv(rows, tile_rows),)

    cost = pl.CostEstimate(
        flops=int(rows * 128 * (4 + 2 * Q * spr)),
        transcendentals=int(rows * (128 + spr)),
        bytes_accessed=int(4 * (rows * 128 + rows * spr + 128 + Q * 128 * spr)),
    )

    out = pl.pallas_call(
        _qnn_kernel,
        out_shape=jax.ShapeDtypeStruct((rows, spr), jnp.float32),
        grid=grid,
        in_specs=[
            pl.BlockSpec((tile_rows, 128), lambda i: (i, 0)),   # angle rows
            pl.BlockSpec((1, 128), lambda i: (0, 0)),           # weights (resident)
            pl.BlockSpec((Q, 128, spr), lambda i: (0, 0, 0)),   # selection (resident)
        ],
        out_specs=pl.BlockSpec((tile_rows, spr), lambda i: (i, 0)),
        compiler_params=pltpu.CompilerParams(
            dimension_semantics=("parallel",),      # shard row tiles (v7x 2 TC)
            vmem_limit_bytes=48 * 1024 * 1024,
        ),
        cost_estimate=cost,
    )(x2, wrow, sel)

    # (rows, spr) flattens row-major into batch order; drop padded samples.
    return out.reshape(-1)[:B]


def _reference_forward(x, weights):
    # Pure-JAX reference of the same analytic forward pass.
    c = jnp.cos(x + weights[None, :])
    p = jnp.prod(c, axis=-1)
    return jax.nn.sigmoid((p + 1.0) * 0.5)


if __name__ == "__main__":
    num_qubits = 4

    key = jax.random.PRNGKey(0)
    kx, kw, kx2 = jax.random.split(key, 3)

    # Deterministic "parameters": weights ~ N(0,1) like torch.randn(num_qubits)
    weights = jax.random.normal(kw, (num_qubits,), dtype=jnp.float32)

    # Small example batch (single tile, ragged lane padding path).
    batch = 8
    x = jax.random.normal(kx, (batch, num_qubits), dtype=jnp.float32)
    out = jax.block_until_ready(quantum_only_qnn_forward(x, weights))
    ref = _reference_forward(x, weights)
    assert out.shape == (batch,)
    assert jnp.allclose(out, ref, atol=5e-5, rtol=1e-4), (out, ref)

    # Second check exercising the multi-tile grid + ragged last tile path.
    batch2 = 300
    x2 = jax.random.normal(kx2, (batch2, num_qubits), dtype=jnp.float32)
    out2 = jax.block_until_ready(
        quantum_only_qnn_forward(x2, weights, tile_rows=8))
    ref2 = _reference_forward(x2, weights)
    assert out2.shape == (batch2,)
    assert jnp.allclose(out2, ref2, atol=5e-5, rtol=1e-4), (out2, ref2)

    print("KERNEL_OK")
</pallas_src>

<mosaic_0001>
module attributes {stable_mosaic.version = 11 : i64} {
  func.func @_qnn_kernel(%arg0: i32, %arg1: memref<8x128xf32, #tpu.memory_space<vmem>>, %arg2: memref<1x128xf32, #tpu.memory_space<vmem>>, %arg3: memref<4x128x32xf32, #tpu.memory_space<vmem>>, %arg4: memref<8x32xf32, #tpu.memory_space<vmem>>) attributes {dimension_semantics = [#tpu.dimension_semantics<parallel>], iteration_bounds = array<i64: 1>, scalar_prefetch = 0 : i64, scratch_operands = 0 : i64, tpu.core_type = #tpu.core_type<tc>, window_params = [{transform_indices = @transform_0, window_bounds = array<i64: 8, 128>}, {pipeline_mode = #tpu.pipeline_mode<synchronous>, transform_indices = @transform_1, window_bounds = array<i64: 1, 128>}, {pipeline_mode = #tpu.pipeline_mode<synchronous>, transform_indices = @transform_2, window_bounds = array<i64: 4, 128, 32>}, {transform_indices = @transform_3, window_bounds = array<i64: 8, 32>}]} {
    %c0 = arith.constant 0 : index
    %c0_0 = arith.constant 0 : index
    %0 = vector.load %arg1[%c0, %c0_0] : memref<8x128xf32, #tpu.memory_space<vmem>>, vector<8x128xf32>
    %c0_1 = arith.constant 0 : index
    %c0_2 = arith.constant 0 : index
    %1 = vector.load %arg2[%c0_1, %c0_2] : memref<1x128xf32, #tpu.memory_space<vmem>>, vector<1x128xf32>
    %2 = vector.broadcast %1 : vector<1x128xf32> to vector<8x128xf32>
    %3 = arith.addf %0, %2 : vector<8x128xf32>
    %4 = math.cos %3 : vector<8x128xf32>
    %c0_3 = arith.constant 0 : index
    %c0_4 = arith.constant 0 : index
    %c0_5 = arith.constant 0 : index
    %5 = vector.load %arg3[%c0_3, %c0_4, %c0_5] : memref<4x128x32xf32, #tpu.memory_space<vmem>>, vector<1x128x32xf32>
    %6 = vector.shape_cast %5 : vector<1x128x32xf32> to vector<128x32xf32>
    %cst = arith.constant dense<0.000000e+00> : vector<8x32xf32>
    %7 = tpu.matmul %4, %6, %cst {dimension_numbers = #tpu.dot_dimension_numbers<[1], [0], [0], [1], [0, 0, 1, 1], [], []>, precision = #tpu.contract_precision<fp32>} : vector<8x128xf32>, vector<128x32xf32>, vector<8x32xf32> -> vector<8x32xf32>
    %c1 = arith.constant 1 : index
    %c0_6 = arith.constant 0 : index
    %c0_7 = arith.constant 0 : index
    %8 = vector.load %arg3[%c1, %c0_6, %c0_7] : memref<4x128x32xf32, #tpu.memory_space<vmem>>, vector<1x128x32xf32>
    %9 = vector.shape_cast %8 : vector<1x128x32xf32> to vector<128x32xf32>
    %cst_8 = arith.constant dense<0.000000e+00> : vector<8x32xf32>
    %10 = tpu.matmul %4, %9, %cst_8 {dimension_numbers = #tpu.dot_dimension_numbers<[1], [0], [0], [1], [0, 0, 1, 1], [], []>, precision = #tpu.contract_precision<fp32>} : vector<8x128xf32>, vector<128x32xf32>, vector<8x32xf32> -> vector<8x32xf32>
    %c2 = arith.constant 2 : index
    %c0_9 = arith.constant 0 : index
    %c0_10 = arith.constant 0 : index
    %11 = vector.load %arg3[%c2, %c0_9, %c0_10] : memref<4x128x32xf32, #tpu.memory_space<vmem>>, vector<1x128x32xf32>
    %12 = vector.shape_cast %11 : vector<1x128x32xf32> to vector<128x32xf32>
    %cst_11 = arith.constant dense<0.000000e+00> : vector<8x32xf32>
    %13 = tpu.matmul %4, %12, %cst_11 {dimension_numbers = #tpu.dot_dimension_numbers<[1], [0], [0], [1], [0, 0, 1, 1], [], []>, precision = #tpu.contract_precision<fp32>} : vector<8x128xf32>, vector<128x32xf32>, vector<8x32xf32> -> vector<8x32xf32>
    %c3 = arith.constant 3 : index
    %c0_12 = arith.constant 0 : index
    %c0_13 = arith.constant 0 : index
    %14 = vector.load %arg3[%c3, %c0_12, %c0_13] : memref<4x128x32xf32, #tpu.memory_space<vmem>>, vector<1x128x32xf32>
    %15 = vector.shape_cast %14 : vector<1x128x32xf32> to vector<128x32xf32>
    %cst_14 = arith.constant dense<0.000000e+00> : vector<8x32xf32>
    %16 = tpu.matmul %4, %15, %cst_14 {dimension_numbers = #tpu.dot_dimension_numbers<[1], [0], [0], [1], [0, 0, 1, 1], [], []>, precision = #tpu.contract_precision<fp32>} : vector<8x128xf32>, vector<128x32xf32>, vector<8x32xf32> -> vector<8x32xf32>
    %17 = arith.mulf %7, %10 : vector<8x32xf32>
    %18 = arith.mulf %13, %16 : vector<8x32xf32>
    %19 = arith.mulf %17, %18 : vector<8x32xf32>
    %cst_15 = arith.constant 1.000000e+00 : f32
    %20 = vector.broadcast %cst_15 : f32 to vector<8x32xf32>
    %21 = arith.addf %19, %20 : vector<8x32xf32>
    %cst_16 = arith.constant 5.000000e-01 : f32
    %22 = vector.broadcast %cst_16 : f32 to vector<8x32xf32>
    %23 = arith.mulf %21, %22 : vector<8x32xf32>
    %cst_17 = arith.constant 5.000000e-01 : f32
    %24 = vector.broadcast %cst_17 : f32 to vector<8x32xf32>
    %25 = arith.mulf %24, %23 : vector<8x32xf32>
    %26 = math.tanh %25 : vector<8x32xf32>
    %cst_18 = arith.constant 5.000000e-01 : f32
    %27 = vector.broadcast %cst_18 : f32 to vector<8x32xf32>
    %28 = arith.mulf %27, %26 : vector<8x32xf32>
    %cst_19 = arith.constant 5.000000e-01 : f32
    %29 = vector.broadcast %cst_19 : f32 to vector<8x32xf32>
    %30 = arith.addf %28, %29 : vector<8x32xf32>
    %c0_20 = arith.constant 0 : index
    %c0_21 = arith.constant 0 : index
    %31 = vector.load %arg4[%c0_20, %c0_21] : memref<8x32xf32, #tpu.memory_space<vmem>>, vector<8x32xf32>
    tpu.vector_store %arg4[%c0_20, %c0_21], %30 {strides = array<i32>} : memref<8x32xf32, #tpu.memory_space<vmem>>, vector<8x32xf32>,
    return
  }
  func.func @transform_0(%arg0: i32) -> (i32, i32) {
    %c0_i32 = arith.constant 0 : i32
    %c0_i32_0 = arith.constant 0 : i32
    return %arg0, %c0_i32 : i32, i32
  }
  func.func @transform_1(%arg0: i32) -> (i32, i32) {
    %c0_i32 = arith.constant 0 : i32
    %c0_i32_0 = arith.constant 0 : i32
    %c0_i32_1 = arith.constant 0 : i32
    return %c0_i32, %c0_i32_0 : i32, i32
  }
  func.func @transform_2(%arg0: i32) -> (i32, i32, i32) {
    %c0_i32 = arith.constant 0 : i32
    %c0_i32_0 = arith.constant 0 : i32
    %c0_i32_1 = arith.constant 0 : i32
    %c0_i32_2 = arith.constant 0 : i32
    return %c0_i32, %c0_i32_0, %c0_i32_1 : i32, i32, i32
  }
  func.func @transform_3(%arg0: i32) -> (i32, i32) {
    %c0_i32 = arith.constant 0 : i32
    %c0_i32_0 = arith.constant 0 : i32
    return %arg0, %c0_i32 : i32, i32
  }
}

</mosaic_0001>

<llo_original>
// kernel: tpu_custom_call.1
$region0: #{tpu_custom_call.1}
  #allocation0 [shape = 'u32[]', space=smem, size = 0x4, offset = 0x4, fixed_abs, tag = 'smem constant byte address 0x4 - core index']
  #allocation1 [shape = 'u32[144,128]{1,0:T(1,128)}', space=vmem, size = 0x12000, scoped, tag = 'internal scratch']
  %s0 = inlined_call_operand.vmem [shape: f32[8,128], index: 0, kind: input, shape index: {}]
  %s1 = inlined_call_operand.vmem [shape: f32[1,128], index: 1, kind: input, shape index: {}]
  %s2 = inlined_call_operand.vmem [shape: f32[4,128,32], index: 2, kind: input, shape index: {}]
  %s3 = inlined_call_operand.hbm [shape: f32[8,32], index: 3, kind: output, shape index: {}]
  %s4 = sld [smem:[#allocation0]]
  $region22: #{tpu_custom_call.1} parent=0
    _
  %s6 = ssub.s32 1, %s4
  %s7 = scalar_select 0, %s6, %s4
  $region1: #{tpu_custom_call.1} parent=0
    #allocation2 [shape = 'u8[4096]{0}', space=vmem, size = 0x1000, scoped, tag = 'output window, operand 0, single buffered']
    #allocation3 [shape = 's32[1]{0}', space=sflag, size = 0x4, scoped, tag = 'scoped memory for tpu_custom_call.1']
    %8 = vsyncpa [#allocation3], 0
    // Predicated region
    $region2: #{tpu_custom_call.1} parent=1 // pred_check
      _
    $region3: #{tpu_custom_call.1} parent=1 // pred_check_branch
      %10 = sbr.rel (0) target = $region5
    $region4: #{tpu_custom_call.1} parent=1 // pred_region
      _
    $region5: #{tpu_custom_call.1} parent=1 // pred_fallthru
      _
    // Predicated region
    $region6: #{tpu_custom_call.1} parent=1 // pred_check
      _
    $region7: #{tpu_custom_call.1} parent=1 // pred_check_branch
      %12 = sbr.rel (0) target = $region9
    $region8: #{tpu_custom_call.1} parent=1 // pred_region
      _
    $region9: #{tpu_custom_call.1} parent=1 // pred_fallthru
      _
    // Predicated region
    $region10: #{tpu_custom_call.1} parent=1 // pred_check
      _
    $region11: #{tpu_custom_call.1} parent=1 // pred_check_branch
      %14 = sbr.rel (0) target = $region13
    $region12: #{tpu_custom_call.1} parent=1 // pred_region
      _
    $region13: #{tpu_custom_call.1} parent=1 // pred_fallthru
      _
    %v15 = vld [vmem:[%s0] sm:$0xff]
    %v16 = vld [vmem:[%s1] sm:$0x1]
    %v18 = vlaneseq
    %v19 = vshrl.u32 %v18, 7
    %v20 = vsub.s32 0, %v19
    %v21 = vrot.slane %v16, %v20
    %v23 = vadd.f32 %v15, %v21
    %v24 = vand.u32 2147483647, %v23
    %vm25 = vcmp.le.f32.partialorder %v24, 0.7853982
    %vm26 = vcmp.lt.s32.totalorder %v23, 0
    %v27 = vand.u32 %v23, 2139095040
    %v28 = vshrl.u32 %v27, 23
    %v29 = vsub.s32 %v28, 127
    %v30 = vand.u32 2147483647, %v23
    %v31 = vand.u32 %v30, 8388607
    %v32 = vor.u32 %v31, 8388608
    %v33 = vsub.s32 0, %v32
    %v34 = vadd.s32 %v29, 1
    %vm35 = vcmp.gt.s32.totalorder %v34, 0
    %v36 = vsel %vm35, %v34, 0
    %v37 = vshrl.u32 %v36, 5
    %v38 = vand.u32 %v36, 31
    %v39 = vsub.s32 32, %v38
    %v40 = vshrl.u32 683565275, %v39
    %v41 = vshll.u32 683565275, %v38
    %v42 = vshrl.u32 2475754826, %v39
    %v43 = vor.u32 %v41, %v42
    %v44 = vshll.u32 2475754826, %v38
    %v45 = vshrl.u32 2131351028, %v39
    %v46 = vor.u32 %v44, %v45
    %v47 = vshll.u32 2131351028, %v38
    %v48 = vshrl.u32 2102212464, %v39
    %v49 = vor.u32 %v47, %v48
    %v50 = vshll.u32 2102212464, %v38
    %v51 = vshrl.u32 920167782, %v39
    %v52 = vor.u32 %v50, %v51
    %v53 = vshll.u32 920167782, %v38
    %v54 = vshrl.u32 1326507024, %v39
    %v55 = vor.u32 %v53, %v54
    %vm56 = vcmp.lt.s32.totalorder %v37, 1
    %vm57 = vcmp.lt.s32.totalorder %v37, 2
    %vm58 = vcmp.lt.s32.totalorder %v37, 3
    %vm59 = vcmp.lt.s32.totalorder %v37, 4
    %v60 = vsel %vm56, %v40, %v43
    %v61 = vsel %vm59, %v49, 2102212464
    %v62 = vsel %vm58, %v46, %v61
    %v63 = vsel %vm57, %v60, %v62
    %v64 = vsel %vm56, %v43, %v46
    %v65 = vsel %vm59, %v52, 920167782
    %v66 = vsel %vm58, %v49, %v65
    %v67 = vsel %vm57, %v64, %v66
    %v68 = vsel %vm56, %v46, %v49
    %v69 = vsel %vm59, %v55, 1326507024
    %v70 = vsel %vm58, %v52, %v69
    %v71 = vsel %vm57, %v68, %v70
    %v72 = vshll.u32 %v32, 8
    %v73 = vmul.u32.u64.compose %v72, %v71
    %v74 = vextract.low.u32 %v73
    %v75 = vextract.high.u32 %v73
    %v76 = vmul.u32.u64.compose %v72, %v67
    %v77 = vextract.low.u32 %v76
    %v78 = vextract.high.u32 %v76
    %v79 = vmul.u32 %v72, %v63
    %v80 = vadd.s32 %v75, %v77
    %vm81 = vc.u32 %v75, %v77
    %v82 = vadd.s32 %v78, 1
    %v83 = vsel %vm81, %v82, %v78
    %v84 = vadd.s32 %v79, %v83
    %v85 = vadd.s32 %v84, 536870912
    %v86 = vshrl.u32 %v85, 30
    %v87 = vshll.u32 %v86, 30
    %v88 = vsub.s32 %v84, %v87
    %vm89 = vcmp.lt.s32.totalorder %v88, 0
    %v90 = vsub.s32 0, %v88
    %v91 = vsel %vm89, %v90, %v88
    %v92 = vclz %v91
    %v93 = vsub.s32 %v92, 2
    %vm94 = vcmp.gt.s32.totalorder 0, %v93
    %v95 = vsel %vm94, 0, %v93
    %v96 = vsub.s32 32, %v95
    %v97 = vshll.u32 %v88, %v95
    %v98 = vshrl.u32 %v80, %v96
    %v99 = vor.u32 %v97, %v98
    %v100 = vsub.s32 4294967266, %v95
    %v101 = vadd.s32 %v100, 127
    %v102 = vshll.u32 %v101, 23
    %v103 = vor.u32 4788187, %v102
    %v104 = vand.u32 2147483647, %v103
    %v106 = vcvt.s32.f32 %v99
    %v107 = vmul.f32 %v106, %v104
    %v108 = vxor.u32 %v107, 2147483648
    %v109 = vsel %vm26, %v108, %v107
    %v110 = vsub.s32 4, %v86
    %v111 = vsel %vm26, %v110, %v86
    %v112 = vsel %vm25, %v23, %v109
    %v113 = vsel %vm25, 0, %v111
    %v114 = vcosq.f32.pop %v112
    %v115 = vsinq.f32.pop %v112
    %vm116 = vweird.f32 %v23
    %v117 = vand.u32 %v113, 3
    %vm118 = vcmp.lt.s32.totalorder %v117, 2
    %vm119 = vcmp.eq.s32.totalorder %v117, 0
    %v120 = vxor.u32 %v115, 2147483648
    %v121 = vsel %vm119, %v114, %v120
    %vm122 = vcmp.eq.s32.totalorder %v117, 2
    %v123 = vxor.u32 %v114, 2147483648
    %v124 = vsel %vm122, %v123, %v115
    %v125 = vsel %vm118, %v121, %v124
    %v126 = vsel %vm116, nan, %v125
    %v127 = vld [vmem:[%s2] sm:$0xff]
    %v128 = vld [vmem:[%s2 + $0x8] sm:$0xff]
    %v129 = vld [vmem:[%s2 + $0x10] sm:$0xff]
    %v130 = vld [vmem:[%s2 + $0x18] sm:$0xff]
    %v131 = vld [vmem:[%s2 + $0x20] sm:$0xff]
    %v132 = vld [vmem:[%s2 + $0x28] sm:$0xff]
    %v133 = vld [vmem:[%s2 + $0x30] sm:$0xff]
    %v134 = vld [vmem:[%s2 + $0x38] sm:$0xff]
    %v135 = vld [vmem:[%s2 + $0x40] sm:$0xff]
    %v136 = vld [vmem:[%s2 + $0x48] sm:$0xff]
    %v137 = vld [vmem:[%s2 + $0x50] sm:$0xff]
    %v138 = vld [vmem:[%s2 + $0x58] sm:$0xff]
    %v139 = vld [vmem:[%s2 + $0x60] sm:$0xff]
    %v140 = vld [vmem:[%s2 + $0x68] sm:$0xff]
    %v141 = vld [vmem:[%s2 + $0x70] sm:$0xff]
    %v142 = vld [vmem:[%s2 + $0x78] sm:$0xff]
    %143 = vmatprep.subr.mxu0 0.0
    %v144 = vand.u32 %v127, 4294901760
    %145 = vmatpush1.msra.mxu0 %v144
    %146 = vmatprep.subr.mxu0 0.0
    %v147 = vand.u32 %v128, 4294901760
    %148 = vmatpush1.msra.mxu0 %v147
    %149 = vmatprep.subr.mxu0 0.0
    %v150 = vand.u32 %v129, 4294901760
    %151 = vmatpush1.msra.mxu0 %v150
    %152 = vmatprep.subr.mxu0 0.0
    %v153 = vand.u32 %v130, 4294901760
    %154 = vmatpush1.msra.mxu0 %v153
    %155 = vmatprep.subr.mxu0 0.0
    %v156 = vand.u32 %v131, 4294901760
    %157 = vmatpush1.msra.mxu0 %v156
    %158 = vmatprep.subr.mxu0 0.0
    %v159 = vand.u32 %v132, 4294901760
    %160 = vmatpush1.msra.mxu0 %v159
    %161 = vmatprep.subr.mxu0 0.0
    %v162 = vand.u32 %v133, 4294901760
    %163 = vmatpush1.msra.mxu0 %v162
    %164 = vmatprep.subr.mxu0 0.0
    %v165 = vand.u32 %v134, 4294901760
    %166 = vmatpush1.msra.mxu0 %v165
    %167 = vmatprep.subr.mxu0 0.0
    %v168 = vand.u32 %v135, 4294901760
    %169 = vmatpush1.msra.mxu0 %v168
    %170 = vmatprep.subr.mxu0 0.0
    %v171 = vand.u32 %v136, 4294901760
    %172 = vmatpush1.msra.mxu0 %v171
    %173 = vmatprep.subr.mxu0 0.0
    %v174 = vand.u32 %v137, 4294901760
    %175 = vmatpush1.msra.mxu0 %v174
    %176 = vmatprep.subr.mxu0 0.0
    %v177 = vand.u32 %v138, 4294901760
    %178 = vmatpush1.msra.mxu0 %v177
    %179 = vmatprep.subr.mxu0 0.0
    %v180 = vand.u32 %v139, 4294901760
    %181 = vmatpush1.msra.mxu0 %v180
    %182 = vmatprep.subr.mxu0 0.0
    %v183 = vand.u32 %v140, 4294901760
    %184 = vmatpush1.msra.mxu0 %v183
    %185 = vmatprep.subr.mxu0 0.0
    %v186 = vand.u32 %v141, 4294901760
    %187 = vmatpush1.msra.mxu0 %v186
    %188 = vmatprep.subr.mxu0 0.0
    %v189 = vand.u32 %v142, 4294901760
    %190 = vmatpush1.msra.mxu0 %v189
    %191 = vmatprep.subr.mxu0 0.0
    %192 = vmatpush1.msra.mxu0 0.0
    %193 = vmatprep.subr.mxu0 0.0
    %194 = vmatpush1.msra.mxu0 0.0
    %195 = vmatprep.subr.mxu0 0.0
    %196 = vmatpush1.msra.mxu0 0.0
    %197 = vmatprep.subr.mxu0 0.0
    %198 = vmatpush1.msra.mxu0 0.0
    %199 = vmatprep.subr.mxu0 0.0
    %200 = vmatpush1.msra.mxu0 0.0
    %201 = vmatprep.subr.mxu0 0.0
    %202 = vmatpush1.msra.mxu0 0.0
    %203 = vmatprep.subr.mxu0 0.0
    %204 = vmatpush1.msra.mxu0 0.0
    %205 = vmatprep.subr.mxu0 0.0
    %206 = vmatpush1.msra.mxu0 0.0
    %207 = vmatprep.subr.mxu0 0.0
    %208 = vmatpush1.msra.mxu0 0.0
    %209 = vmatprep.subr.mxu0 0.0
    %210 = vmatpush1.msra.mxu0 0.0
    %211 = vmatprep.subr.mxu0 0.0
    %212 = vmatpush1.msra.mxu0 0.0
    %213 = vmatprep.subr.mxu0 0.0
    %214 = vmatpush1.msra.mxu0 0.0
    %215 = vmatprep.subr.mxu0 0.0
    %216 = vmatpush1.msra.mxu0 0.0
    %217 = vmatprep.subr.mxu0 0.0
    %218 = vmatpush1.msra.mxu0 0.0
    %219 = vmatprep.subr.mxu0 0.0
    %220 = vmatpush1.msra.mxu0 0.0
    %221 = vmatprep.subr.mxu0 0.0
    %222 = vmatpush1.msra.mxu0 0.0
    %223 = vmatprep.mubr.f32.mxu0 0.0
    %v224 = vand.u32 %v126, 4294901760
    %v225 = vsub.f32 %v126, %v224
    %v226 = vand.u32 %v225, 4294901760
    %v227 = vsub.f32 %v225, %v226
    %v228 = vand.u32 %v227, 4294901760
    %229 = vmatmul.mubr.f32.gmra.mrb[0].mxu0 %v228
    %v230 = vpop.f32.mrb[0].mxu0
    %v231 = vadd.f32 0.0, %v230
    %v232 = vpop.f32.mrb[0].mxu0
    %233 = vdwg.mxu0
    %234 = vmatprep.subr.mxu0 0.0
    %v235 = vand.u32 %v127, 4294901760
    %v236 = vsub.f32 %v127, %v235
    %v237 = vand.u32 %v236, 4294901760
    %v238 = vsub.f32 %v236, %v237
    %v239 = vand.u32 %v238, 4294901760
    %240 = vmatpush1.msra.mxu0 %v239
    %241 = vmatprep.subr.mxu0 0.0
    %v242 = vand.u32 %v128, 4294901760
    %v243 = vsub.f32 %v128, %v242
    %v244 = vand.u32 %v243, 4294901760
    %v245 = vsub.f32 %v243, %v244
    %v246 = vand.u32 %v245, 4294901760
    %247 = vmatpush1.msra.mxu0 %v246
    %248 = vmatprep.subr.mxu0 0.0
    %v249 = vand.u32 %v129, 4294901760
    %v250 = vsub.f32 %v129, %v249
    %v251 = vand.u32 %v250, 4294901760
    %v252 = vsub.f32 %v250, %v251
    %v253 = vand.u32 %v252, 4294901760
    %254 = vmatpush1.msra.mxu0 %v253
    %255 = vmatprep.subr.mxu0 0.0
    %v256 = vand.u32 %v130, 4294901760
    %v257 = vsub.f32 %v130, %v256
    %v258 = vand.u32 %v257, 4294901760
    %v259 = vsub.f32 %v257, %v258
    %v260 = vand.u32 %v259, 4294901760
    %261 = vmatpush1.msra.mxu0 %v260
    %262 = vmatprep.subr.mxu0 0.0
    %v263 = vand.u32 %v131, 4294901760
    %v264 = vsub.f32 %v131, %v263
    %v265 = vand.u32 %v264, 4294901760
    %v266 = vsub.f32 %v264, %v265
    %v267 = vand.u32 %v266, 4294901760
    %268 = vmatpush1.msra.mxu0 %v267
    %269 = vmatprep.subr.mxu0 0.0
    %v270 = vand.u32 %v132, 4294901760
    %v271 = vsub.f32 %v132, %v270
    %v272 = vand.u32 %v271, 4294901760
    %v273 = vsub.f32 %v271, %v272
    %v274 = vand.u32 %v273, 4294901760
    %275 = vmatpush1.msra.mxu0 %v274
    %276 = vmatprep.subr.mxu0 0.0
    %v277 = vand.u32 %v133, 4294901760
    %v278 = vsub.f32 %v133, %v277
    %v279 = vand.u32 %v278, 4294901760
    %v280 = vsub.f32 %v278, %v279
    %v281 = vand.u32 %v280, 4294901760
    %282 = vmatpush1.msra.mxu0 %v281
    %283 = vmatprep.subr.mxu0 0.0
    %v284 = vand.u32 %v134, 4294901760
    %v285 = vsub.f32 %v134, %v284
    %v286 = vand.u32 %v285, 4294901760
    %v287 = vsub.f32 %v285, %v286
    %v288 = vand.u32 %v287, 4294901760
    %289 = vmatpush1.msra.mxu0 %v288
    %290 = vmatprep.subr.mxu0 0.0
    %v291 = vand.u32 %v135, 4294901760
    %v292 = vsub.f32 %v135, %v291
    %v293 = vand.u32 %v292, 4294901760
    %v294 = vsub.f32 %v292, %v293
    %v295 = vand.u32 %v294, 4294901760
    %296 = vmatpush1.msra.mxu0 %v295
    %297 = vmatprep.subr.mxu0 0.0
    %v298 = vand.u32 %v136, 4294901760
    %v299 = vsub.f32 %v136, %v298
    %v300 = vand.u32 %v299, 4294901760
    %v301 = vsub.f32 %v299, %v300
    %v302 = vand.u32 %v301, 4294901760
    %303 = vmatpush1.msra.mxu0 %v302
    %304 = vmatprep.subr.mxu0 0.0
    %v305 = vand.u32 %v137, 4294901760
    %v306 = vsub.f32 %v137, %v305
    %v307 = vand.u32 %v306, 4294901760
    %v308 = vsub.f32 %v306, %v307
    %v309 = vand.u32 %v308, 4294901760
    %310 = vmatpush1.msra.mxu0 %v309
    %311 = vmatprep.subr.mxu0 0.0
    %v312 = vand.u32 %v138, 4294901760
    %v313 = vsub.f32 %v138, %v312
    %v314 = vand.u32 %v313, 4294901760
    %v315 = vsub.f32 %v313, %v314
    %v316 = vand.u32 %v315, 4294901760
    %317 = vmatpush1.msra.mxu0 %v316
    %318 = vmatprep.subr.mxu0 0.0
    %v319 = vand.u32 %v139, 4294901760
    %v320 = vsub.f32 %v139, %v319
    %v321 = vand.u32 %v320, 4294901760
    %v322 = vsub.f32 %v320, %v321
    %v323 = vand.u32 %v322, 4294901760
    %324 = vmatpush1.msra.mxu0 %v323
    %325 = vmatprep.subr.mxu0 0.0
    %v326 = vand.u32 %v140, 4294901760
    %v327 = vsub.f32 %v140, %v326
    %v328 = vand.u32 %v327, 4294901760
    %v329 = vsub.f32 %v327, %v328
    %v330 = vand.u32 %v329, 4294901760
    %331 = vmatpush1.msra.mxu0 %v330
    %332 = vmatprep.subr.mxu0 0.0
    %v333 = vand.u32 %v141, 4294901760
    %v334 = vsub.f32 %v141, %v333
    %v335 = vand.u32 %v334, 4294901760
    %v336 = vsub.f32 %v334, %v335
    %v337 = vand.u32 %v336, 4294901760
    %338 = vmatpush1.msra.mxu0 %v337
    %339 = vmatprep.subr.mxu0 0.0
    %v340 = vand.u32 %v142, 4294901760
    %v341 = vsub.f32 %v142, %v340
    %v342 = vand.u32 %v341, 4294901760
    %v343 = vsub.f32 %v341, %v342
    %v344 = vand.u32 %v343, 4294901760
    %345 = vmatpush1.msra.mxu0 %v344
    %346 = vmatprep.subr.mxu0 0.0
    %347 = vmatpush1.msra.mxu0 0.0
    %348 = vmatprep.subr.mxu0 0.0
    %349 = vmatpush1.msra.mxu0 0.0
    %350 = vmatprep.subr.mxu0 0.0
    %351 = vmatpush1.msra.mxu0 0.0
    %352 = vmatprep.subr.mxu0 0.0
    %353 = vmatpush1.msra.mxu0 0.0
    %354 = vmatprep.subr.mxu0 0.0
    %355 = vmatpush1.msra.mxu0 0.0
    %356 = vmatprep.subr.mxu0 0.0
    %357 = vmatpush1.msra.mxu0 0.0
    %358 = vmatprep.subr.mxu0 0.0
    %359 = vmatpush1.msra.mxu0 0.0
    %360 = vmatprep.subr.mxu0 0.0
    %361 = vmatpush1.msra.mxu0 0.0
    %362 = vmatprep.subr.mxu0 0.0
    %363 = vmatpush1.msra.mxu0 0.0
    %364 = vmatprep.subr.mxu0 0.0
    %365 = vmatpush1.msra.mxu0 0.0
    %366 = vmatprep.subr.mxu0 0.0
    %367 = vmatpush1.msra.mxu0 0.0
    %368 = vmatprep.subr.mxu0 0.0
    %369 = vmatpush1.msra.mxu0 0.0
    %370 = vmatprep.subr.mxu0 0.0
    %371 = vmatpush1.msra.mxu0 0.0
    %372 = vmatprep.subr.mxu0 0.0
    %373 = vmatpush1.msra.mxu0 0.0
    %374 = vmatprep.subr.mxu0 0.0
    %375 = vmatpush1.msra.mxu0 0.0
    %376 = vmatprep.subr.mxu0 0.0
    %377 = vmatpush1.msra.mxu0 0.0
    %378 = vmatprep.mubr.f32.mxu0 0.0
    %v379 = vand.u32 %v126, 4294901760
    %380 = vmatmul.mubr.f32.gmra.mrb[0].mxu0 %v379
    %v381 = vpop.f32.mrb[0].mxu0
    %v382 = vadd.f32 %v231, %v381
    %v383 = vpop.f32.mrb[0].mxu0
    %384 = vdwg.mxu0
    %385 = vmatprep.subr.mxu0 0.0
    %v386 = vand.u32 %v127, 4294901760
    %v387 = vsub.f32 %v127, %v386
    %388 = vmatpush1.msra.mxu0 %v387
    %389 = vmatprep.subr.mxu0 0.0
    %v390 = vand.u32 %v128, 4294901760
    %v391 = vsub.f32 %v128, %v390
    %392 = vmatpush1.msra.mxu0 %v391
    %393 = vmatprep.subr.mxu0 0.0
    %v394 = vand.u32 %v129, 4294901760
    %v395 = vsub.f32 %v129, %v394
    %396 = vmatpush1.msra.mxu0 %v395
    %397 = vmatprep.subr.mxu0 0.0
    %v398 = vand.u32 %v130, 4294901760
    %v399 = vsub.f32 %v130, %v398
    %400 = vmatpush1.msra.mxu0 %v399
    %401 = vmatprep.subr.mxu0 0.0
    %v402 = vand.u32 %v131, 4294901760
    %v403 = vsub.f32 %v131, %v402
    %404 = vmatpush1.msra.mxu0 %v403
    %405 = vmatprep.subr.mxu0 0.0
    %v406 = vand.u32 %v132, 4294901760
    %v407 = vsub.f32 %v132, %v406
    %408 = vmatpush1.msra.mxu0 %v407
    %409 = vmatprep.subr.mxu0 0.0
    %v410 = vand.u32 %v133, 4294901760
    %v411 = vsub.f32 %v133, %v410
    %412 = vmatpush1.msra.mxu0 %v411
    %413 = vmatprep.subr.mxu0 0.0
    %v414 = vand.u32 %v134, 4294901760
    %v415 = vsub.f32 %v134, %v414
    %416 = vmatpush1.msra.mxu0 %v415
    %417 = vmatprep.subr.mxu0 0.0
    %v418 = vand.u32 %v135, 4294901760
    %v419 = vsub.f32 %v135, %v418
    %420 = vmatpush1.msra.mxu0 %v419
    %421 = vmatprep.subr.mxu0 0.0
    %v422 = vand.u32 %v136, 4294901760
    %v423 = vsub.f32 %v136, %v422
    %424 = vmatpush1.msra.mxu0 %v423
    %425 = vmatprep.subr.mxu0 0.0
    %v426 = vand.u32 %v137, 4294901760
    %v427 = vsub.f32 %v137, %v426
    %428 = vmatpush1.msra.mxu0 %v427
    %429 = vmatprep.subr.mxu0 0.0
    %v430 = vand.u32 %v138, 4294901760
    %v431 = vsub.f32 %v138, %v430
    %432 = vmatpush1.msra.mxu0 %v431
    %433 = vmatprep.subr.mxu0 0.0
    %v434 = vand.u32 %v139, 4294901760
    %v435 = vsub.f32 %v139, %v434
    %436 = vmatpush1.msra.mxu0 %v435
    %437 = vmatprep.subr.mxu0 0.0
    %v438 = vand.u32 %v140, 4294901760
    %v439 = vsub.f32 %v140, %v438
    %440 = vmatpush1.msra.mxu0 %v439
    %441 = vmatprep.subr.mxu0 0.0
    %v442 = vand.u32 %v141, 4294901760
    %v443 = vsub.f32 %v141, %v442
    %444 = vmatpush1.msra.mxu0 %v443
    %445 = vmatprep.subr.mxu0 0.0
    %v446 = vand.u32 %v142, 4294901760
    %v447 = vsub.f32 %v142, %v446
    %448 = vmatpush1.msra.mxu0 %v447
    %449 = vmatprep.subr.mxu0 0.0
    %450 = vmatpush1.msra.mxu0 0.0
    %451 = vmatprep.subr.mxu0 0.0
    %452 = vmatpush1.msra.mxu0 0.0
    %453 = vmatprep.subr.mxu0 0.0
    %454 = vmatpush1.msra.mxu0 0.0
    %455 = vmatprep.subr.mxu0 0.0
    %456 = vmatpush1.msra.mxu0 0.0
    %457 = vmatprep.subr.mxu0 0.0
    %458 = vmatpush1.msra.mxu0 0.0
    %459 = vmatprep.subr.mxu0 0.0
    %460 = vmatpush1.msra.mxu0 0.0
    %461 = vmatprep.subr.mxu0 0.0
    %462 = vmatpush1.msra.mxu0 0.0
    %463 = vmatprep.subr.mxu0 0.0
    %464 = vmatpush1.msra.mxu0 0.0
    %465 = vmatprep.subr.mxu0 0.0
    %466 = vmatpush1.msra.mxu0 0.0
    %467 = vmatprep.subr.mxu0 0.0
    %468 = vmatpush1.msra.mxu0 0.0
    %469 = vmatprep.subr.mxu0 0.0
    %470 = vmatpush1.msra.mxu0 0.0
    %471 = vmatprep.subr.mxu0 0.0
    %472 = vmatpush1.msra.mxu0 0.0
    %473 = vmatprep.subr.mxu0 0.0
    %474 = vmatpush1.msra.mxu0 0.0
    %475 = vmatprep.subr.mxu0 0.0
    %476 = vmatpush1.msra.mxu0 0.0
    %477 = vmatprep.subr.mxu0 0.0
    %478 = vmatpush1.msra.mxu0 0.0
    %479 = vmatprep.subr.mxu0 0.0
    %480 = vmatpush1.msra.mxu0 0.0
    %481 = vmatprep.mubr.f32.mxu0 0.0
    %v482 = vand.u32 %v126, 4294901760
    %v483 = vsub.f32 %v126, %v482
    %484 = vmatmul.mubr.f32.gmra.mrb[0].mxu0 %v483
    %v485 = vpop.f32.mrb[0].mxu0
    %v486 = vadd.f32 %v382, %v485
    %v487 = vpop.f32.mrb[0].mxu0
    %488 = vdwg.mxu0
    %489 = vmatprep.subr.mxu0 0.0
    %v490 = vand.u32 %v127, 4294901760
    %491 = vmatpush1.msra.mxu0 %v490
    %492 = vmatprep.subr.mxu0 0.0
    %v493 = vand.u32 %v128, 4294901760
    %494 = vmatpush1.msra.mxu0 %v493
    %495 = vmatprep.subr.mxu0 0.0
    %v496 = vand.u32 %v129, 4294901760
    %497 = vmatpush1.msra.mxu0 %v496
    %498 = vmatprep.subr.mxu0 0.0
    %v499 = vand.u32 %v130, 4294901760
    %500 = vmatpush1.msra.mxu0 %v499
    %501 = vmatprep.subr.mxu0 0.0
    %v502 = vand.u32 %v131, 4294901760
    %503 = vmatpush1.msra.mxu0 %v502
    %504 = vmatprep.subr.mxu0 0.0
    %v505 = vand.u32 %v132, 4294901760
    %506 = vmatpush1.msra.mxu0 %v505
    %507 = vmatprep.subr.mxu0 0.0
    %v508 = vand.u32 %v133, 4294901760
    %509 = vmatpush1.msra.mxu0 %v508
    %510 = vmatprep.subr.mxu0 0.0
    %v511 = vand.u32 %v134, 4294901760
    %512 = vmatpush1.msra.mxu0 %v511
    %513 = vmatprep.subr.mxu0 0.0
    %v514 = vand.u32 %v135, 4294901760
    %515 = vmatpush1.msra.mxu0 %v514
    %516 = vmatprep.subr.mxu0 0.0
    %v517 = vand.u32 %v136, 4294901760
    %518 = vmatpush1.msra.mxu0 %v517
    %519 = vmatprep.subr.mxu0 0.0
    %v520 = vand.u32 %v137, 4294901760
    %521 = vmatpush1.msra.mxu0 %v520
    %522 = vmatprep.subr.mxu0 0.0
    %v523 = vand.u32 %v138, 4294901760
    %524 = vmatpush1.msra.mxu0 %v523
    %525 = vmatprep.subr.mxu0 0.0
    %v526 = vand.u32 %v139, 4294901760
    %527 = vmatpush1.msra.mxu0 %v526
    %528 = vmatprep.subr.mxu0 0.0
    %v529 = vand.u32 %v140, 4294901760
    %530 = vmatpush1.msra.mxu0 %v529
    %531 = vmatprep.subr.mxu0 0.0
    %v532 = vand.u32 %v141, 4294901760
    %533 = vmatpush1.msra.mxu0 %v532
    %534 = vmatprep.subr.mxu0 0.0
    %v535 = vand.u32 %v142, 4294901760
    %536 = vmatpush1.msra.mxu0 %v535
    %537 = vmatprep.subr.mxu0 0.0
    %538 = vmatpush1.msra.mxu0 0.0
    %539 = vmatprep.subr.mxu0 0.0
    %540 = vmatpush1.msra.mxu0 0.0
    %541 = vmatprep.subr.mxu0 0.0
    %542 = vmatpush1.msra.mxu0 0.0
    %543 = vmatprep.subr.mxu0 0.0
    %544 = vmatpush1.msra.mxu0 0.0
    %545 = vmatprep.subr.mxu0 0.0
    %546 = vmatpush1.msra.mxu0 0.0
    %547 = vmatprep.subr.mxu0 0.0
    %548 = vmatpush1.msra.mxu0 0.0
    %549 = vmatprep.subr.mxu0 0.0
    %550 = vmatpush1.msra.mxu0 0.0
    %551 = vmatprep.subr.mxu0 0.0
    %552 = vmatpush1.msra.mxu0 0.0
    %553 = vmatprep.subr.mxu0 0.0
    %554 = vmatpush1.msra.mxu0 0.0
    %555 = vmatprep.subr.mxu0 0.0
    %556 = vmatpush1.msra.mxu0 0.0
    %557 = vmatprep.subr.mxu0 0.0
    %558 = vmatpush1.msra.mxu0 0.0
    %559 = vmatprep.subr.mxu0 0.0
    %560 = vmatpush1.msra.mxu0 0.0
    %561 = vmatprep.subr.mxu0 0.0
    %562 = vmatpush1.msra.mxu0 0.0
    %563 = vmatprep.subr.mxu0 0.0
    %564 = vmatpush1.msra.mxu0 0.0
    %565 = vmatprep.subr.mxu0 0.0
    %566 = vmatpush1.msra.mxu0 0.0
    %567 = vmatprep.subr.mxu0 0.0
    %568 = vmatpush1.msra.mxu0 0.0
    %569 = vmatprep.mubr.f32.mxu0 0.0
    %v570 = vand.u32 %v126, 4294901760
    %v571 = vsub.f32 %v126, %v570
    %v572 = vand.u32 %v571, 4294901760
    %573 = vmatmul.mubr.f32.gmra.mrb[0].mxu0 %v572
    %v574 = vpop.f32.mrb[0].mxu0
    %v575 = vadd.f32 %v486, %v574
    %v576 = vpop.f32.mrb[0].mxu0
    %577 = vdwg.mxu0
    %578 = vmatprep.subr.mxu0 0.0
    %v579 = vand.u32 %v127, 4294901760
    %v580 = vsub.f32 %v127, %v579
    %v581 = vand.u32 %v580, 4294901760
    %582 = vmatpush1.msra.mxu0 %v581
    %583 = vmatprep.subr.mxu0 0.0
    %v584 = vand.u32 %v128, 4294901760
    %v585 = vsub.f32 %v128, %v584
    %v586 = vand.u32 %v585, 4294901760
    %587 = vmatpush1.msra.mxu0 %v586
    %588 = vmatprep.subr.mxu0 0.0
    %v589 = vand.u32 %v129, 4294901760
    %v590 = vsub.f32 %v129, %v589
    %v591 = vand.u32 %v590, 4294901760
    %592 = vmatpush1.msra.mxu0 %v591
    %593 = vmatprep.subr.mxu0 0.0
    %v594 = vand.u32 %v130, 4294901760
    %v595 = vsub.f32 %v130, %v594
    %v596 = vand.u32 %v595, 4294901760
    %597 = vmatpush1.msra.mxu0 %v596
    %598 = vmatprep.subr.mxu0 0.0
    %v599 = vand.u32 %v131, 4294901760
    %v600 = vsub.f32 %v131, %v599
    %v601 = vand.u32 %v600, 4294901760
    %602 = vmatpush1.msra.mxu0 %v601
    %603 = vmatprep.subr.mxu0 0.0
    %v604 = vand.u32 %v132, 4294901760
    %v605 = vsub.f32 %v132, %v604
    %v606 = vand.u32 %v605, 4294901760
    %607 = vmatpush1.msra.mxu0 %v606
    %608 = vmatprep.subr.mxu0 0.0
    %v609 = vand.u32 %v133, 4294901760
    %v610 = vsub.f32 %v133, %v609
    %v611 = vand.u32 %v610, 4294901760
    %612 = vmatpush1.msra.mxu0 %v611
    %613 = vmatprep.subr.mxu0 0.0
    %v614 = vand.u32 %v134, 4294901760
    %v615 = vsub.f32 %v134, %v614
    %v616 = vand.u32 %v615, 4294901760
    %617 = vmatpush1.msra.mxu0 %v616
    %618 = vmatprep.subr.mxu0 0.0
    %v619 = vand.u32 %v135, 4294901760
    %v620 = vsub.f32 %v135, %v619
    %v621 = vand.u32 %v620, 4294901760
    %622 = vmatpush1.msra.mxu0 %v621
    %623 = vmatprep.subr.mxu0 0.0
    %v624 = vand.u32 %v136, 4294901760
    %v625 = vsub.f32 %v136, %v624
    %v626 = vand.u32 %v625, 4294901760
    %627 = vmatpush1.msra.mxu0 %v626
    %628 = vmatprep.subr.mxu0 0.0
    %v629 = vand.u32 %v137, 4294901760
    %v630 = vsub.f32 %v137, %v629
    %v631 = vand.u32 %v630, 4294901760
    %632 = vmatpush1.msra.mxu0 %v631
    %633 = vmatprep.subr.mxu0 0.0
    %v634 = vand.u32 %v138, 4294901760
    %v635 = vsub.f32 %v138, %v634
    %v636 = vand.u32 %v635, 4294901760
    %637 = vmatpush1.msra.mxu0 %v636
    %638 = vmatprep.subr.mxu0 0.0
    %v639 = vand.u32 %v139, 4294901760
    %v640 = vsub.f32 %v139, %v639
    %v641 = vand.u32 %v640, 4294901760
    %642 = vmatpush1.msra.mxu0 %v641
    %643 = vmatprep.subr.mxu0 0.0
    %v644 = vand.u32 %v140, 4294901760
    %v645 = vsub.f32 %v140, %v644
    %v646 = vand.u32 %v645, 4294901760
    %647 = vmatpush1.msra.mxu0 %v646
    %648 = vmatprep.subr.mxu0 0.0
    %v649 = vand.u32 %v141, 4294901760
    %v650 = vsub.f32 %v141, %v649
    %v651 = vand.u32 %v650, 4294901760
    %652 = vmatpush1.msra.mxu0 %v651
    %653 = vmatprep.subr.mxu0 0.0
    %v654 = vand.u32 %v142, 4294901760
    %v655 = vsub.f32 %v142, %v654
    %v656 = vand.u32 %v655, 4294901760
    %657 = vmatpush1.msra.mxu0 %v656
    %658 = vmatprep.subr.mxu0 0.0
    %659 = vmatpush1.msra.mxu0 0.0
    %660 = vmatprep.subr.mxu0 0.0
    %661 = vmatpush1.msra.mxu0 0.0
    %662 = vmatprep.subr.mxu0 0.0
    %663 = vmatpush1.msra.mxu0 0.0
    %664 = vmatprep.subr.mxu0 0.0
    %665 = vmatpush1.msra.mxu0 0.0
    %666 = vmatprep.subr.mxu0 0.0
    %667 = vmatpush1.msra.mxu0 0.0
    %668 = vmatprep.subr.mxu0 0.0
    %669 = vmatpush1.msra.mxu0 0.0
    %670 = vmatprep.subr.mxu0 0.0
    %671 = vmatpush1.msra.mxu0 0.0
    %672 = vmatprep.subr.mxu0 0.0
    %673 = vmatpush1.msra.mxu0 0.0
    %674 = vmatprep.subr.mxu0 0.0
    %675 = vmatpush1.msra.mxu0 0.0
    %676 = vmatprep.subr.mxu0 0.0
    %677 = vmatpush1.msra.mxu0 0.0
    %678 = vmatprep.subr.mxu0 0.0
    %679 = vmatpush1.msra.mxu0 0.0
    %680 = vmatprep.subr.mxu0 0.0
    %681 = vmatpush1.msra.mxu0 0.0
    %682 = vmatprep.subr.mxu0 0.0
    %683 = vmatpush1.msra.mxu0 0.0
    %684 = vmatprep.subr.mxu0 0.0
    %685 = vmatpush1.msra.mxu0 0.0
    %686 = vmatprep.subr.mxu0 0.0
    %687 = vmatpush1.msra.mxu0 0.0
    %688 = vmatprep.subr.mxu0 0.0
    %689 = vmatpush1.msra.mxu0 0.0
    %690 = vmatprep.mubr.f32.mxu0 0.0
    %v691 = vand.u32 %v126, 4294901760
    %692 = vmatmul.mubr.f32.gmra.mrb[0].mxu0 %v691
    %v693 = vpop.f32.mrb[0].mxu0
    %v694 = vadd.f32 %v575, %v693
    %v695 = vpop.f32.mrb[0].mxu0
    %696 = vdwg.mxu0
    %697 = vmatprep.subr.mxu0 0.0
    %v698 = vand.u32 %v127, 4294901760
    %699 = vmatpush1.msra.mxu0 %v698
    %700 = vmatprep.subr.mxu0 0.0
    %v701 = vand.u32 %v128, 4294901760
    %702 = vmatpush1.msra.mxu0 %v701
    %703 = vmatprep.subr.mxu0 0.0
    %v704 = vand.u32 %v129, 4294901760
    %705 = vmatpush1.msra.mxu0 %v704
    %706 = vmatprep.subr.mxu0 0.0
    %v707 = vand.u32 %v130, 4294901760
    %708 = vmatpush1.msra.mxu0 %v707
    %709 = vmatprep.subr.mxu0 0.0
    %v710 = vand.u32 %v131, 4294901760
    %711 = vmatpush1.msra.mxu0 %v710
    %712 = vmatprep.subr.mxu0 0.0
    %v713 = vand.u32 %v132, 4294901760
    %714 = vmatpush1.msra.mxu0 %v713
    %715 = vmatprep.subr.mxu0 0.0
    %v716 = vand.u32 %v133, 4294901760
    %717 = vmatpush1.msra.mxu0 %v716
    %718 = vmatprep.subr.mxu0 0.0
    %v719 = vand.u32 %v134, 4294901760
    %720 = vmatpush1.msra.mxu0 %v719
    %721 = vmatprep.subr.mxu0 0.0
    %v722 = vand.u32 %v135, 4294901760
    %723 = vmatpush1.msra.mxu0 %v722
    %724 = vmatprep.subr.mxu0 0.0
    %v725 = vand.u32 %v136, 4294901760
    %726 = vmatpush1.msra.mxu0 %v725
    %727 = vmatprep.subr.mxu0 0.0
    %v728 = vand.u32 %v137, 4294901760
    %729 = vmatpush1.msra.mxu0 %v728
    %730 = vmatprep.subr.mxu0 0.0
    %v731 = vand.u32 %v138, 4294901760
    %732 = vmatpush1.msra.mxu0 %v731
    %733 = vmatprep.subr.mxu0 0.0
    %v734 = vand.u32 %v139, 4294901760
    %735 = vmatpush1.msra.mxu0 %v734
    %736 = vmatprep.subr.mxu0 0.0
    %v737 = vand.u32 %v140, 4294901760
    %738 = vmatpush1.msra.mxu0 %v737
    %739 = vmatprep.subr.mxu0 0.0
    %v740 = vand.u32 %v141, 4294901760
    %741 = vmatpush1.msra.mxu0 %v740
    %742 = vmatprep.subr.mxu0 0.0
    %v743 = vand.u32 %v142, 4294901760
    %744 = vmatpush1.msra.mxu0 %v743
    %745 = vmatprep.subr.mxu0 0.0
    %746 = vmatpush1.msra.mxu0 0.0
    %747 = vmatprep.subr.mxu0 0.0
    %748 = vmatpush1.msra.mxu0 0.0
    %749 = vmatprep.subr.mxu0 0.0
    %750 = vmatpush1.msra.mxu0 0.0
    %751 = vmatprep.subr.mxu0 0.0
    %752 = vmatpush1.msra.mxu0 0.0
    %753 = vmatprep.subr.mxu0 0.0
    %754 = vmatpush1.msra.mxu0 0.0
    %755 = vmatprep.subr.mxu0 0.0
    %756 = vmatpush1.msra.mxu0 0.0
    %757 = vmatprep.subr.mxu0 0.0
    %758 = vmatpush1.msra.mxu0 0.0
    %759 = vmatprep.subr.mxu0 0.0
    %760 = vmatpush1.msra.mxu0 0.0
    %761 = vmatprep.subr.mxu0 0.0
    %762 = vmatpush1.msra.mxu0 0.0
    %763 = vmatprep.subr.mxu0 0.0
    %764 = vmatpush1.msra.mxu0 0.0
    %765 = vmatprep.subr.mxu0 0.0
    %766 = vmatpush1.msra.mxu0 0.0
    %767 = vmatprep.subr.mxu0 0.0
    %768 = vmatpush1.msra.mxu0 0.0
    %769 = vmatprep.subr.mxu0 0.0
    %770 = vmatpush1.msra.mxu0 0.0
    %771 = vmatprep.subr.mxu0 0.0
    %772 = vmatpush1.msra.mxu0 0.0
    %773 = vmatprep.subr.mxu0 0.0
    %774 = vmatpush1.msra.mxu0 0.0
    %775 = vmatprep.subr.mxu0 0.0
    %776 = vmatpush1.msra.mxu0 0.0
    %777 = vmatprep.mubr.f32.mxu0 0.0
    %v778 = vand.u32 %v126, 4294901760
    %779 = vmatmul.mubr.f32.gmra.mrb[0].mxu0 %v778
    %v780 = vpop.f32.mrb[0].mxu0
    %v781 = vadd.f32 %v694, %v780
    %v782 = vpop.f32.mrb[0].mxu0
    %783 = vdwg.mxu0
    %s784 = scalar_lea.vmem %s2, 128
    %v785 = vld [vmem:[%s784] sm:$0xff]
    %v786 = vld [vmem:[%s784 + $0x8] sm:$0xff]
    %v787 = vld [vmem:[%s784 + $0x10] sm:$0xff]
    %v788 = vld [vmem:[%s784 + $0x18] sm:$0xff]
    %v789 = vld [vmem:[%s784 + $0x20] sm:$0xff]
    %v790 = vld [vmem:[%s784 + $0x28] sm:$0xff]
    %v791 = vld [vmem:[%s784 + $0x30] sm:$0xff]
    %v792 = vld [vmem:[%s784 + $0x38] sm:$0xff]
    %v793 = vld [vmem:[%s784 + $0x40] sm:$0xff]
    %v794 = vld [vmem:[%s784 + $0x48] sm:$0xff]
    %v795 = vld [vmem:[%s784 + $0x50] sm:$0xff]
    %v796 = vld [vmem:[%s784 + $0x58] sm:$0xff]
    %v797 = vld [vmem:[%s784 + $0x60] sm:$0xff]
    %v798 = vld [vmem:[%s784 + $0x68] sm:$0xff]
    %v799 = vld [vmem:[%s784 + $0x70] sm:$0xff]
    %v800 = vld [vmem:[%s784 + $0x78] sm:$0xff]
    %801 = vmatprep.subr.mxu0 0.0
    %v802 = vand.u32 %v785, 4294901760
    %803 = vmatpush1.msra.mxu0 %v802
    %804 = vmatprep.subr.mxu0 0.0
    %v805 = vand.u32 %v786, 4294901760
    %806 = vmatpush1.msra.mxu0 %v805
    %807 = vmatprep.subr.mxu0 0.0
    %v808 = vand.u32 %v787, 4294901760
    %809 = vmatpush1.msra.mxu0 %v808
    %810 = vmatprep.subr.mxu0 0.0
    %v811 = vand.u32 %v788, 4294901760
    %812 = vmatpush1.msra.mxu0 %v811
    %813 = vmatprep.subr.mxu0 0.0
    %v814 = vand.u32 %v789, 4294901760
    %815 = vmatpush1.msra.mxu0 %v814
    %816 = vmatprep.subr.mxu0 0.0
    %v817 = vand.u32 %v790, 4294901760
    %818 = vmatpush1.msra.mxu0 %v817
    %819 = vmatprep.subr.mxu0 0.0
    %v820 = vand.u32 %v791, 4294901760
    %821 = vmatpush1.msra.mxu0 %v820
    %822 = vmatprep.subr.mxu0 0.0
    %v823 = vand.u32 %v792, 4294901760
    %824 = vmatpush1.msra.mxu0 %v823
    %825 = vmatprep.subr.mxu0 0.0
    %v826 = vand.u32 %v793, 4294901760
    %827 = vmatpush1.msra.mxu0 %v826
    %828 = vmatprep.subr.mxu0 0.0
    %v829 = vand.u32 %v794, 4294901760
    %830 = vmatpush1.msra.mxu0 %v829
    %831 = vmatprep.subr.mxu0 0.0
    %v832 = vand.u32 %v795, 4294901760
    %833 = vmatpush1.msra.mxu0 %v832
    %834 = vmatprep.subr.mxu0 0.0
    %v835 = vand.u32 %v796, 4294901760
    %836 = vmatpush1.msra.mxu0 %v835
    %837 = vmatprep.subr.mxu0 0.0
    %v838 = vand.u32 %v797, 4294901760
    %839 = vmatpush1.msra.mxu0 %v838
    %840 = vmatprep.subr.mxu0 0.0
    %v841 = vand.u32 %v798, 4294901760
    %842 = vmatpush1.msra.mxu0 %v841
    %843 = vmatprep.subr.mxu0 0.0
    %v844 = vand.u32 %v799, 4294901760
    %845 = vmatpush1.msra.mxu0 %v844
    %846 = vmatprep.subr.mxu0 0.0
    %v847 = vand.u32 %v800, 4294901760
    %848 = vmatpush1.msra.mxu0 %v847
    %849 = vmatprep.subr.mxu0 0.0
    %850 = vmatpush1.msra.mxu0 0.0
    %851 = vmatprep.subr.mxu0 0.0
    %852 = vmatpush1.msra.mxu0 0.0
    %853 = vmatprep.subr.mxu0 0.0
    %854 = vmatpush1.msra.mxu0 0.0
    %855 = vmatprep.subr.mxu0 0.0
    %856 = vmatpush1.msra.mxu0 0.0
    %857 = vmatprep.subr.mxu0 0.0
    %858 = vmatpush1.msra.mxu0 0.0
    %859 = vmatprep.subr.mxu0 0.0
    %860 = vmatpush1.msra.mxu0 0.0
    %861 = vmatprep.subr.mxu0 0.0
    %862 = vmatpush1.msra.mxu0 0.0
    %863 = vmatprep.subr.mxu0 0.0
    %864 = vmatpush1.msra.mxu0 0.0
    %865 = vmatprep.subr.mxu0 0.0
    %866 = vmatpush1.msra.mxu0 0.0
    %867 = vmatprep.subr.mxu0 0.0
    %868 = vmatpush1.msra.mxu0 0.0
    %869 = vmatprep.subr.mxu0 0.0
    %870 = vmatpush1.msra.mxu0 0.0
    %871 = vmatprep.subr.mxu0 0.0
    %872 = vmatpush1.msra.mxu0 0.0
    %873 = vmatprep.subr.mxu0 0.0
    %874 = vmatpush1.msra.mxu0 0.0
    %875 = vmatprep.subr.mxu0 0.0
    %876 = vmatpush1.msra.mxu0 0.0
    %877 = vmatprep.subr.mxu0 0.0
    %878 = vmatpush1.msra.mxu0 0.0
    %879 = vmatprep.subr.mxu0 0.0
    %880 = vmatpush1.msra.mxu0 0.0
    %881 = vmatprep.mubr.f32.mxu0 0.0
    %v882 = vand.u32 %v126, 4294901760
    %v883 = vsub.f32 %v126, %v882
    %v884 = vand.u32 %v883, 4294901760
    %v885 = vsub.f32 %v883, %v884
    %v886 = vand.u32 %v885, 4294901760
    %887 = vmatmul.mubr.f32.gmra.mrb[0].mxu0 %v886
    %v888 = vpop.f32.mrb[0].mxu0
    %v889 = vadd.f32 0.0, %v888
    %v890 = vpop.f32.mrb[0].mxu0
    %891 = vdwg.mxu0
    %892 = vmatprep.subr.mxu0 0.0
    %v893 = vand.u32 %v785, 4294901760
    %v894 = vsub.f32 %v785, %v893
    %v895 = vand.u32 %v894, 4294901760
    %v896 = vsub.f32 %v894, %v895
    %v897 = vand.u32 %v896, 4294901760
    %898 = vmatpush1.msra.mxu0 %v897
    %899 = vmatprep.subr.mxu0 0.0
    %v900 = vand.u32 %v786, 4294901760
    %v901 = vsub.f32 %v786, %v900
    %v902 = vand.u32 %v901, 4294901760
    %v903 = vsub.f32 %v901, %v902
    %v904 = vand.u32 %v903, 4294901760
    %905 = vmatpush1.msra.mxu0 %v904
    %906 = vmatprep.subr.mxu0 0.0
    %v907 = vand.u32 %v787, 4294901760
    %v908 = vsub.f32 %v787, %v907
    %v909 = vand.u32 %v908, 4294901760
    %v910 = vsub.f32 %v908, %v909
    %v911 = vand.u32 %v910, 4294901760
    %912 = vmatpush1.msra.mxu0 %v911
    %913 = vmatprep.subr.mxu0 0.0
    %v914 = vand.u32 %v788, 4294901760
    %v915 = vsub.f32 %v788, %v914
    %v916 = vand.u32 %v915, 4294901760
    %v917 = vsub.f32 %v915, %v916
    %v918 = vand.u32 %v917, 4294901760
    %919 = vmatpush1.msra.mxu0 %v918
    %920 = vmatprep.subr.mxu0 0.0
    %v921 = vand.u32 %v789, 4294901760
    %v922 = vsub.f32 %v789, %v921
    %v923 = vand.u32 %v922, 4294901760
    %v924 = vsub.f32 %v922, %v923
    %v925 = vand.u32 %v924, 4294901760
    %926 = vmatpush1.msra.mxu0 %v925
    %927 = vmatprep.subr.mxu0 0.0
    %v928 = vand.u32 %v790, 4294901760
    %v929 = vsub.f32 %v790, %v928
    %v930 = vand.u32 %v929, 4294901760
    %v931 = vsub.f32 %v929, %v930
    %v932 = vand.u32 %v931, 4294901760
    %933 = vmatpush1.msra.mxu0 %v932
    %934 = vmatprep.subr.mxu0 0.0
    %v935 = vand.u32 %v791, 4294901760
    %v936 = vsub.f32 %v791, %v935
    %v937 = vand.u32 %v936, 4294901760
    %v938 = vsub.f32 %v936, %v937
    %v939 = vand.u32 %v938, 4294901760
    %940 = vmatpush1.msra.mxu0 %v939
    %941 = vmatprep.subr.mxu0 0.0
    %v942 = vand.u32 %v792, 4294901760
    %v943 = vsub.f32 %v792, %v942
    %v944 = vand.u32 %v943, 4294901760
    %v945 = vsub.f32 %v943, %v944
    %v946 = vand.u32 %v945, 4294901760
    %947 = vmatpush1.msra.mxu0 %v946
    %948 = vmatprep.subr.mxu0 0.0
    %v949 = vand.u32 %v793, 4294901760
    %v950 = vsub.f32 %v793, %v949
    %v951 = vand.u32 %v950, 4294901760
    %v952 = vsub.f32 %v950, %v951
    %v953 = vand.u32 %v952, 4294901760
    %954 = vmatpush1.msra.mxu0 %v953
    %955 = vmatprep.subr.mxu0 0.0
    %v956 = vand.u32 %v794, 4294901760
    %v957 = vsub.f32 %v794, %v956
    %v958 = vand.u32 %v957, 4294901760
    %v959 = vsub.f32 %v957, %v958
    %v960 = vand.u32 %v959, 4294901760
    %961 = vmatpush1.msra.mxu0 %v960
    %962 = vmatprep.subr.mxu0 0.0
    %v963 = vand.u32 %v795, 4294901760
    %v964 = vsub.f32 %v795, %v963
    %v965 = vand.u32 %v964, 4294901760
    %v966 = vsub.f32 %v964, %v965
    %v967 = vand.u32 %v966, 4294901760
    %968 = vmatpush1.msra.mxu0 %v967
    %969 = vmatprep.subr.mxu0 0.0
    %v970 = vand.u32 %v796, 4294901760
    %v971 = vsub.f32 %v796, %v970
    %v972 = vand.u32 %v971, 4294901760
    %v973 = vsub.f32 %v971, %v972
    %v974 = vand.u32 %v973, 4294901760
    %975 = vmatpush1.msra.mxu0 %v974
    %976 = vmatprep.subr.mxu0 0.0
    %v977 = vand.u32 %v797, 4294901760
    %v978 = vsub.f32 %v797, %v977
    %v979 = vand.u32 %v978, 4294901760
    %v980 = vsub.f32 %v978, %v979
    %v981 = vand.u32 %v980, 4294901760
    %982 = vmatpush1.msra.mxu0 %v981
    %983 = vmatprep.subr.mxu0 0.0
    %v984 = vand.u32 %v798, 4294901760
    %v985 = vsub.f32 %v798, %v984
    %v986 = vand.u32 %v985, 4294901760
    %v987 = vsub.f32 %v985, %v986
    %v988 = vand.u32 %v987, 4294901760
    %989 = vmatpush1.msra.mxu0 %v988
    %990 = vmatprep.subr.mxu0 0.0
    %v991 = vand.u32 %v799, 4294901760
    %v992 = vsub.f32 %v799, %v991
    %v993 = vand.u32 %v992, 4294901760
    %v994 = vsub.f32 %v992, %v993
    %v995 = vand.u32 %v994, 4294901760
    %996 = vmatpush1.msra.mxu0 %v995
    %997 = vmatprep.subr.mxu0 0.0
    %v998 = vand.u32 %v800, 4294901760
    %v999 = vsub.f32 %v800, %v998
    %v1000 = vand.u32 %v999, 4294901760
    %v1001 = vsub.f32 %v999, %v1000
    %v1002 = vand.u32 %v1001, 4294901760
    %1003 = vmatpush1.msra.mxu0 %v1002
    %1004 = vmatprep.subr.mxu0 0.0
    %1005 = vmatpush1.msra.mxu0 0.0
    %1006 = vmatprep.subr.mxu0 0.0
    %1007 = vmatpush1.msra.mxu0 0.0
    %1008 = vmatprep.subr.mxu0 0.0
    %1009 = vmatpush1.msra.mxu0 0.0
    %1010 = vmatprep.subr.mxu0 0.0
    %1011 = vmatpush1.msra.mxu0 0.0
    %1012 = vmatprep.subr.mxu0 0.0
    %1013 = vmatpush1.msra.mxu0 0.0
    %1014 = vmatprep.subr.mxu0 0.0
    %1015 = vmatpush1.msra.mxu0 0.0
    %1016 = vmatprep.subr.mxu0 0.0
    %1017 = vmatpush1.msra.mxu0 0.0
    %1018 = vmatprep.subr.mxu0 0.0
    %1019 = vmatpush1.msra.mxu0 0.0
    %1020 = vmatprep.subr.mxu0 0.0
    %1021 = vmatpush1.msra.mxu0 0.0
    %1022 = vmatprep.subr.mxu0 0.0
    %1023 = vmatpush1.msra.mxu0 0.0
    %1024 = vmatprep.subr.mxu0 0.0
    %1025 = vmatpush1.msra.mxu0 0.0
    %1026 = vmatprep.subr.mxu0 0.0
    %1027 = vmatpush1.msra.mxu0 0.0
    %1028 = vmatprep.subr.mxu0 0.0
    %1029 = vmatpush1.msra.mxu0 0.0
    %1030 = vmatprep.subr.mxu0 0.0
    %1031 = vmatpush1.msra.mxu0 0.0
    %1032 = vmatprep.subr.mxu0 0.0
    %1033 = vmatpush1.msra.mxu0 0.0
    %1034 = vmatprep.subr.mxu0 0.0
    %1035 = vmatpush1.msra.mxu0 0.0
    %1036 = vmatprep.mubr.f32.mxu0 0.0
    %v1037 = vand.u32 %v126, 4294901760
    %1038 = vmatmul.mubr.f32.gmra.mrb[0].mxu0 %v1037
    %v1039 = vpop.f32.mrb[0].mxu0
    %v1040 = vadd.f32 %v889, %v1039
    %v1041 = vpop.f32.mrb[0].mxu0
    %1042 = vdwg.mxu0
    %1043 = vmatprep.subr.mxu0 0.0
    %v1044 = vand.u32 %v785, 4294901760
    %v1045 = vsub.f32 %v785, %v1044
    %1046 = vmatpush1.msra.mxu0 %v1045
    %1047 = vmatprep.subr.mxu0 0.0
    %v1048 = vand.u32 %v786, 4294901760
    %v1049 = vsub.f32 %v786, %v1048
    %1050 = vmatpush1.msra.mxu0 %v1049
    %1051 = vmatprep.subr.mxu0 0.0
    %v1052 = vand.u32 %v787, 4294901760
    %v1053 = vsub.f32 %v787, %v1052
    %1054 = vmatpush1.msra.mxu0 %v1053
    %1055 = vmatprep.subr.mxu0 0.0
    %v1056 = vand.u32 %v788, 4294901760
    %v1057 = vsub.f32 %v788, %v1056
    %1058 = vmatpush1.msra.mxu0 %v1057
    %1059 = vmatprep.subr.mxu0 0.0
    %v1060 = vand.u32 %v789, 4294901760
    %v1061 = vsub.f32 %v789, %v1060
    %1062 = vmatpush1.msra.mxu0 %v1061
    %1063 = vmatprep.subr.mxu0 0.0
    %v1064 = vand.u32 %v790, 4294901760
    %v1065 = vsub.f32 %v790, %v1064
    %1066 = vmatpush1.msra.mxu0 %v1065
    %1067 = vmatprep.subr.mxu0 0.0
    %v1068 = vand.u32 %v791, 4294901760
    %v1069 = vsub.f32 %v791, %v1068
    %1070 = vmatpush1.msra.mxu0 %v1069
    %1071 = vmatprep.subr.mxu0 0.0
    %v1072 = vand.u32 %v792, 4294901760
    %v1073 = vsub.f32 %v792, %v1072
    %1074 = vmatpush1.msra.mxu0 %v1073
    %1075 = vmatprep.subr.mxu0 0.0
    %v1076 = vand.u32 %v793, 4294901760
    %v1077 = vsub.f32 %v793, %v1076
    %1078 = vmatpush1.msra.mxu0 %v1077
    %1079 = vmatprep.subr.mxu0 0.0
    %v1080 = vand.u32 %v794, 4294901760
    %v1081 = vsub.f32 %v794, %v1080
    %1082 = vmatpush1.msra.mxu0 %v1081
    %1083 = vmatprep.subr.mxu0 0.0
    %v1084 = vand.u32 %v795, 4294901760
    %v1085 = vsub.f32 %v795, %v1084
    %1086 = vmatpush1.msra.mxu0 %v1085
    %1087 = vmatprep.subr.mxu0 0.0
    %v1088 = vand.u32 %v796, 4294901760
    %v1089 = vsub.f32 %v796, %v1088
    %1090 = vmatpush1.msra.mxu0 %v1089
    %1091 = vmatprep.subr.mxu0 0.0
    %v1092 = vand.u32 %v797, 4294901760
    %v1093 = vsub.f32 %v797, %v1092
    %1094 = vmatpush1.msra.mxu0 %v1093
    %1095 = vmatprep.subr.mxu0 0.0
    %v1096 = vand.u32 %v798, 4294901760
    %v1097 = vsub.f32 %v798, %v1096
    %1098 = vmatpush1.msra.mxu0 %v1097
    %1099 = vmatprep.subr.mxu0 0.0
    %v1100 = vand.u32 %v799, 4294901760
    %v1101 = vsub.f32 %v799, %v1100
    %1102 = vmatpush1.msra.mxu0 %v1101
    %1103 = vmatprep.subr.mxu0 0.0
    %v1104 = vand.u32 %v800, 4294901760
    %v1105 = vsub.f32 %v800, %v1104
    %1106 = vmatpush1.msra.mxu0 %v1105
    %1107 = vmatprep.subr.mxu0 0.0
    %1108 = vmatpush1.msra.mxu0 0.0
    %1109 = vmatprep.subr.mxu0 0.0
    %1110 = vmatpush1.msra.mxu0 0.0
    %1111 = vmatprep.subr.mxu0 0.0
    %1112 = vmatpush1.msra.mxu0 0.0
    %1113 = vmatprep.subr.mxu0 0.0
    %1114 = vmatpush1.msra.mxu0 0.0
    %1115 = vmatprep.subr.mxu0 0.0
    %1116 = vmatpush1.msra.mxu0 0.0
    %1117 = vmatprep.subr.mxu0 0.0
    %1118 = vmatpush1.msra.mxu0 0.0
    %1119 = vmatprep.subr.mxu0 0.0
    %1120 = vmatpush1.msra.mxu0 0.0
    %1121 = vmatprep.subr.mxu0 0.0
    %1122 = vmatpush1.msra.mxu0 0.0
    %1123 = vmatprep.subr.mxu0 0.0
    %1124 = vmatpush1.msra.mxu0 0.0
    %1125 = vmatprep.subr.mxu0 0.0
    %1126 = vmatpush1.msra.mxu0 0.0
    %1127 = vmatprep.subr.mxu0 0.0
    %1128 = vmatpush1.msra.mxu0 0.0
    %1129 = vmatprep.subr.mxu0 0.0
    %1130 = vmatpush1.msra.mxu0 0.0
    %1131 = vmatprep.subr.mxu0 0.0
    %1132 = vmatpush1.msra.mxu0 0.0
    %1133 = vmatprep.subr.mxu0 0.0
    %1134 = vmatpush1.msra.mxu0 0.0
    %1135 = vmatprep.subr.mxu0 0.0
    %1136 = vmatpush1.msra.mxu0 0.0
    %1137 = vmatprep.subr.mxu0 0.0
    %1138 = vmatpush1.msra.mxu0 0.0
    %1139 = vmatprep.mubr.f32.mxu0 0.0
    %v1140 = vand.u32 %v126, 4294901760
    %v1141 = vsub.f32 %v126, %v1140
    %1142 = vmatmul.mubr.f32.gmra.mrb[0].mxu0 %v1141
    %v1143 = vpop.f32.mrb[0].mxu0
    %v1144 = vadd.f32 %v1040, %v1143
    %v1145 = vpop.f32.mrb[0].mxu0
    %1146 = vdwg.mxu0
    %1147 = vmatprep.subr.mxu0 0.0
    %v1148 = vand.u32 %v785, 4294901760
    %1149 = vmatpush1.msra.mxu0 %v1148
    %1150 = vmatprep.subr.mxu0 0.0
    %v1151 = vand.u32 %v786, 4294901760
    %1152 = vmatpush1.msra.mxu0 %v1151
    %1153 = vmatprep.subr.mxu0 0.0
    %v1154 = vand.u32 %v787, 4294901760
    %1155 = vmatpush1.msra.mxu0 %v1154
    %1156 = vmatprep.subr.mxu0 0.0
    %v1157 = vand.u32 %v788, 4294901760
    %1158 = vmatpush1.msra.mxu0 %v1157
    %1159 = vmatprep.subr.mxu0 0.0
    %v1160 = vand.u32 %v789, 4294901760
    %1161 = vmatpush1.msra.mxu0 %v1160
    %1162 = vmatprep.subr.mxu0 0.0
    %v1163 = vand.u32 %v790, 4294901760
    %1164 = vmatpush1.msra.mxu0 %v1163
    %1165 = vmatprep.subr.mxu0 0.0
    %v1166 = vand.u32 %v791, 4294901760
    %1167 = vmatpush1.msra.mxu0 %v1166
    %1168 = vmatprep.subr.mxu0 0.0
    %v1169 = vand.u32 %v792, 4294901760
    %1170 = vmatpush1.msra.mxu0 %v1169
    %1171 = vmatprep.subr.mxu0 0.0
    %v1172 = vand.u32 %v793, 4294901760
    %1173 = vmatpush1.msra.mxu0 %v1172
    %1174 = vmatprep.subr.mxu0 0.0
    %v1175 = vand.u32 %v794, 4294901760
    %1176 = vmatpush1.msra.mxu0 %v1175
    %1177 = vmatprep.subr.mxu0 0.0
    %v1178 = vand.u32 %v795, 4294901760
    %1179 = vmatpush1.msra.mxu0 %v1178
    %1180 = vmatprep.subr.mxu0 0.0
    %v1181 = vand.u32 %v796, 4294901760
    %1182 = vmatpush1.msra.mxu0 %v1181
    %1183 = vmatprep.subr.mxu0 0.0
    %v1184 = vand.u32 %v797, 4294901760
    %1185 = vmatpush1.msra.mxu0 %v1184
    %1186 = vmatprep.subr.mxu0 0.0
    %v1187 = vand.u32 %v798, 4294901760
    %1188 = vmatpush1.msra.mxu0 %v1187
    %1189 = vmatprep.subr.mxu0 0.0
    %v1190 = vand.u32 %v799, 4294901760
    %1191 = vmatpush1.msra.mxu0 %v1190
    %1192 = vmatprep.subr.mxu0 0.0
    %v1193 = vand.u32 %v800, 4294901760
    %1194 = vmatpush1.msra.mxu0 %v1193
    %1195 = vmatprep.subr.mxu0 0.0
    %1196 = vmatpush1.msra.mxu0 0.0
    %1197 = vmatprep.subr.mxu0 0.0
    %1198 = vmatpush1.msra.mxu0 0.0
    %1199 = vmatprep.subr.mxu0 0.0
    %1200 = vmatpush1.msra.mxu0 0.0
    %1201 = vmatprep.subr.mxu0 0.0
    %1202 = vmatpush1.msra.mxu0 0.0
    %1203 = vmatprep.subr.mxu0 0.0
    %1204 = vmatpush1.msra.mxu0 0.0
    %1205 = vmatprep.subr.mxu0 0.0
    %1206 = vmatpush1.msra.mxu0 0.0
    %1207 = vmatprep.subr.mxu0 0.0
    %1208 = vmatpush1.msra.mxu0 0.0
    %1209 = vmatprep.subr.mxu0 0.0
    %1210 = vmatpush1.msra.mxu0 0.0
    %1211 = vmatprep.subr.mxu0 0.0
    %1212 = vmatpush1.msra.mxu0 0.0
    %1213 = vmatprep.subr.mxu0 0.0
    %1214 = vmatpush1.msra.mxu0 0.0
    %1215 = vmatprep.subr.mxu0 0.0
    %1216 = vmatpush1.msra.mxu0 0.0
    %1217 = vmatprep.subr.mxu0 0.0
    %1218 = vmatpush1.msra.mxu0 0.0
    %1219 = vmatprep.subr.mxu0 0.0
    %1220 = vmatpush1.msra.mxu0 0.0
    %1221 = vmatprep.subr.mxu0 0.0
    %1222 = vmatpush1.msra.mxu0 0.0
    %1223 = vmatprep.subr.mxu0 0.0
    %1224 = vmatpush1.msra.mxu0 0.0
    %1225 = vmatprep.subr.mxu0 0.0
    %1226 = vmatpush1.msra.mxu0 0.0
    %1227 = vmatprep.mubr.f32.mxu0 0.0
    %v1228 = vand.u32 %v126, 4294901760
    %v1229 = vsub.f32 %v126, %v1228
    %v1230 = vand.u32 %v1229, 4294901760
    %1231 = vmatmul.mubr.f32.gmra.mrb[0].mxu0 %v1230
    %v1232 = vpop.f32.mrb[0].mxu0
    %v1233 = vadd.f32 %v1144, %v1232
    %v1234 = vpop.f32.mrb[0].mxu0
    %1235 = vdwg.mxu0
    %1236 = vmatprep.subr.mxu0 0.0
    %v1237 = vand.u32 %v785, 4294901760
    %v1238 = vsub.f32 %v785, %v1237
    %v1239 = vand.u32 %v1238, 4294901760
    %1240 = vmatpush1.msra.mxu0 %v1239
    %1241 = vmatprep.subr.mxu0 0.0
    %v1242 = vand.u32 %v786, 4294901760
    %v1243 = vsub.f32 %v786, %v1242
    %v1244 = vand.u32 %v1243, 4294901760
    %1245 = vmatpush1.msra.mxu0 %v1244
    %1246 = vmatprep.subr.mxu0 0.0
    %v1247 = vand.u32 %v787, 4294901760
    %v1248 = vsub.f32 %v787, %v1247
    %v1249 = vand.u32 %v1248, 4294901760
    %1250 = vmatpush1.msra.mxu0 %v1249
    %1251 = vmatprep.subr.mxu0 0.0
    %v1252 = vand.u32 %v788, 4294901760
    %v1253 = vsub.f32 %v788, %v1252
    %v1254 = vand.u32 %v1253, 4294901760
    %1255 = vmatpush1.msra.mxu0 %v1254
    %1256 = vmatprep.subr.mxu0 0.0
    %v1257 = vand.u32 %v789, 4294901760
    %v1258 = vsub.f32 %v789, %v1257
    %v1259 = vand.u32 %v1258, 4294901760
    %1260 = vmatpush1.msra.mxu0 %v1259
    %1261 = vmatprep.subr.mxu0 0.0
    %v1262 = vand.u32 %v790, 4294901760
    %v1263 = vsub.f32 %v790, %v1262
    %v1264 = vand.u32 %v1263, 4294901760
    %1265 = vmatpush1.msra.mxu0 %v1264
    %1266 = vmatprep.subr.mxu0 0.0
    %v1267 = vand.u32 %v791, 4294901760
    %v1268 = vsub.f32 %v791, %v1267
    %v1269 = vand.u32 %v1268, 4294901760
    %1270 = vmatpush1.msra.mxu0 %v1269
    %1271 = vmatprep.subr.mxu0 0.0
    %v1272 = vand.u32 %v792, 4294901760
    %v1273 = vsub.f32 %v792, %v1272
    %v1274 = vand.u32 %v1273, 4294901760
    %1275 = vmatpush1.msra.mxu0 %v1274
    %1276 = vmatprep.subr.mxu0 0.0
    %v1277 = vand.u32 %v793, 4294901760
    %v1278 = vsub.f32 %v793, %v1277
    %v1279 = vand.u32 %v1278, 4294901760
    %1280 = vmatpush1.msra.mxu0 %v1279
    %1281 = vmatprep.subr.mxu0 0.0
    %v1282 = vand.u32 %v794, 4294901760
    %v1283 = vsub.f32 %v794, %v1282
    %v1284 = vand.u32 %v1283, 4294901760
    %1285 = vmatpush1.msra.mxu0 %v1284
    %1286 = vmatprep.subr.mxu0 0.0
    %v1287 = vand.u32 %v795, 4294901760
    %v1288 = vsub.f32 %v795, %v1287
    %v1289 = vand.u32 %v1288, 4294901760
    %1290 = vmatpush1.msra.mxu0 %v1289
    %1291 = vmatprep.subr.mxu0 0.0
    %v1292 = vand.u32 %v796, 4294901760
    %v1293 = vsub.f32 %v796, %v1292
    %v1294 = vand.u32 %v1293, 4294901760
    %1295 = vmatpush1.msra.mxu0 %v1294
    %1296 = vmatprep.subr.mxu0 0.0
    %v1297 = vand.u32 %v797, 4294901760
    %v1298 = vsub.f32 %v797, %v1297
    %v1299 = vand.u32 %v1298, 4294901760
    %1300 = vmatpush1.msra.mxu0 %v1299
    %1301 = vmatprep.subr.mxu0 0.0
    %v1302 = vand.u32 %v798, 4294901760
    %v1303 = vsub.f32 %v798, %v1302
    %v1304 = vand.u32 %v1303, 4294901760
    %1305 = vmatpush1.msra.mxu0 %v1304
    %1306 = vmatprep.subr.mxu0 0.0
    %v1307 = vand.u32 %v799, 4294901760
    %v1308 = vsub.f32 %v799, %v1307
    %v1309 = vand.u32 %v1308, 4294901760
    %1310 = vmatpush1.msra.mxu0 %v1309
    %1311 = vmatprep.subr.mxu0 0.0
    %v1312 = vand.u32 %v800, 4294901760
    %v1313 = vsub.f32 %v800, %v1312
    %v1314 = vand.u32 %v1313, 4294901760
    %1315 = vmatpush1.msra.mxu0 %v1314
    %1316 = vmatprep.subr.mxu0 0.0
    %1317 = vmatpush1.msra.mxu0 0.0
    %1318 = vmatprep.subr.mxu0 0.0
    %1319 = vmatpush1.msra.mxu0 0.0
    %1320 = vmatprep.subr.mxu0 0.0
    %1321 = vmatpush1.msra.mxu0 0.0
    %1322 = vmatprep.subr.mxu0 0.0
    %1323 = vmatpush1.msra.mxu0 0.0
    %1324 = vmatprep.subr.mxu0 0.0
    %1325 = vmatpush1.msra.mxu0 0.0
    %1326 = vmatprep.subr.mxu0 0.0
    %1327 = vmatpush1.msra.mxu0 0.0
    %1328 = vmatprep.subr.mxu0 0.0
    %1329 = vmatpush1.msra.mxu0 0.0
    %1330 = vmatprep.subr.mxu0 0.0
    %1331 = vmatpush1.msra.mxu0 0.0
    %1332 = vmatprep.subr.mxu0 0.0
    %1333 = vmatpush1.msra.mxu0 0.0
    %1334 = vmatprep.subr.mxu0 0.0
    %1335 = vmatpush1.msra.mxu0 0.0
    %1336 = vmatprep.subr.mxu0 0.0
    %1337 = vmatpush1.msra.mxu0 0.0
    %1338 = vmatprep.subr.mxu0 0.0
    %1339 = vmatpush1.msra.mxu0 0.0
    %1340 = vmatprep.subr.mxu0 0.0
    %1341 = vmatpush1.msra.mxu0 0.0
    %1342 = vmatprep.subr.mxu0 0.0
    %1343 = vmatpush1.msra.mxu0 0.0
    %1344 = vmatprep.subr.mxu0 0.0
    %1345 = vmatpush1.msra.mxu0 0.0
    %1346 = vmatprep.subr.mxu0 0.0
    %1347 = vmatpush1.msra.mxu0 0.0
    %1348 = vmatprep.mubr.f32.mxu0 0.0
    %v1349 = vand.u32 %v126, 4294901760
    %1350 = vmatmul.mubr.f32.gmra.mrb[0].mxu0 %v1349
    %v1351 = vpop.f32.mrb[0].mxu0
    %v1352 = vadd.f32 %v1233, %v1351
    %v1353 = vpop.f32.mrb[0].mxu0
    %1354 = vdwg.mxu0
    %1355 = vmatprep.subr.mxu0 0.0
    %v1356 = vand.u32 %v785, 4294901760
    %1357 = vmatpush1.msra.mxu0 %v1356
    %1358 = vmatprep.subr.mxu0 0.0
    %v1359 = vand.u32 %v786, 4294901760
    %1360 = vmatpush1.msra.mxu0 %v1359
    %1361 = vmatprep.subr.mxu0 0.0
    %v1362 = vand.u32 %v787, 4294901760
    %1363 = vmatpush1.msra.mxu0 %v1362
    %1364 = vmatprep.subr.mxu0 0.0
    %v1365 = vand.u32 %v788, 4294901760
    %1366 = vmatpush1.msra.mxu0 %v1365
    %1367 = vmatprep.subr.mxu0 0.0
    %v1368 = vand.u32 %v789, 4294901760
    %1369 = vmatpush1.msra.mxu0 %v1368
    %1370 = vmatprep.subr.mxu0 0.0
    %v1371 = vand.u32 %v790, 4294901760
    %1372 = vmatpush1.msra.mxu0 %v1371
    %1373 = vmatprep.subr.mxu0 0.0
    %v1374 = vand.u32 %v791, 4294901760
    %1375 = vmatpush1.msra.mxu0 %v1374
    %1376 = vmatprep.subr.mxu0 0.0
    %v1377 = vand.u32 %v792, 4294901760
    %1378 = vmatpush1.msra.mxu0 %v1377
    %1379 = vmatprep.subr.mxu0 0.0
    %v1380 = vand.u32 %v793, 4294901760
    %1381 = vmatpush1.msra.mxu0 %v1380
    %1382 = vmatprep.subr.mxu0 0.0
    %v1383 = vand.u32 %v794, 4294901760
    %1384 = vmatpush1.msra.mxu0 %v1383
    %1385 = vmatprep.subr.mxu0 0.0
    %v1386 = vand.u32 %v795, 4294901760
    %1387 = vmatpush1.msra.mxu0 %v1386
    %1388 = vmatprep.subr.mxu0 0.0
    %v1389 = vand.u32 %v796, 4294901760
    %1390 = vmatpush1.msra.mxu0 %v1389
    %1391 = vmatprep.subr.mxu0 0.0
    %v1392 = vand.u32 %v797, 4294901760
    %1393 = vmatpush1.msra.mxu0 %v1392
    %1394 = vmatprep.subr.mxu0 0.0
    %v1395 = vand.u32 %v798, 4294901760
    %1396 = vmatpush1.msra.mxu0 %v1395
    %1397 = vmatprep.subr.mxu0 0.0
    %v1398 = vand.u32 %v799, 4294901760
    %1399 = vmatpush1.msra.mxu0 %v1398
    %1400 = vmatprep.subr.mxu0 0.0
    %v1401 = vand.u32 %v800, 4294901760
    %1402 = vmatpush1.msra.mxu0 %v1401
    %1403 = vmatprep.subr.mxu0 0.0
    %1404 = vmatpush1.msra.mxu0 0.0
    %1405 = vmatprep.subr.mxu0 0.0
    %1406 = vmatpush1.msra.mxu0 0.0
    %1407 = vmatprep.subr.mxu0 0.0
    %1408 = vmatpush1.msra.mxu0 0.0
    %1409 = vmatprep.subr.mxu0 0.0
    %1410 = vmatpush1.msra.mxu0 0.0
    %1411 = vmatprep.subr.mxu0 0.0
    %1412 = vmatpush1.msra.mxu0 0.0
    %1413 = vmatprep.subr.mxu0 0.0
    %1414 = vmatpush1.msra.mxu0 0.0
    %1415 = vmatprep.subr.mxu0 0.0
    %1416 = vmatpush1.msra.mxu0 0.0
    %1417 = vmatprep.subr.mxu0 0.0
    %1418 = vmatpush1.msra.mxu0 0.0
    %1419 = vmatprep.subr.mxu0 0.0
    %1420 = vmatpush1.msra.mxu0 0.0
    %1421 = vmatprep.subr.mxu0 0.0
    %1422 = vmatpush1.msra.mxu0 0.0
    %1423 = vmatprep.subr.mxu0 0.0
    %1424 = vmatpush1.msra.mxu0 0.0
    %1425 = vmatprep.subr.mxu0 0.0
    %1426 = vmatpush1.msra.mxu0 0.0
    %1427 = vmatprep.subr.mxu0 0.0
    %1428 = vmatpush1.msra.mxu0 0.0
    %1429 = vmatprep.subr.mxu0 0.0
    %1430 = vmatpush1.msra.mxu0 0.0
    %1431 = vmatprep.subr.mxu0 0.0
    %1432 = vmatpush1.msra.mxu0 0.0
    %1433 = vmatprep.subr.mxu0 0.0
    %1434 = vmatpush1.msra.mxu0 0.0
    %1435 = vmatprep.mubr.f32.mxu0 0.0
    %v1436 = vand.u32 %v126, 4294901760
    %1437 = vmatmul.mubr.f32.gmra.mrb[0].mxu0 %v1436
    %v1438 = vpop.f32.mrb[0].mxu0
    %v1439 = vadd.f32 %v1352, %v1438
    %v1440 = vpop.f32.mrb[0].mxu0
    %1441 = vdwg.mxu0
    %s1442 = scalar_lea.vmem %s2, 256
    %v1443 = vld [vmem:[%s1442] sm:$0xff]
    %v1444 = vld [vmem:[%s1442 + $0x8] sm:$0xff]
    %v1445 = vld [vmem:[%s1442 + $0x10] sm:$0xff]
    %v1446 = vld [vmem:[%s1442 + $0x18] sm:$0xff]
    %v1447 = vld [vmem:[%s1442 + $0x20] sm:$0xff]
    %v1448 = vld [vmem:[%s1442 + $0x28] sm:$0xff]
    %v1449 = vld [vmem:[%s1442 + $0x30] sm:$0xff]
    %v1450 = vld [vmem:[%s1442 + $0x38] sm:$0xff]
    %v1451 = vld [vmem:[%s1442 + $0x40] sm:$0xff]
    %v1452 = vld [vmem:[%s1442 + $0x48] sm:$0xff]
    %v1453 = vld [vmem:[%s1442 + $0x50] sm:$0xff]
    %v1454 = vld [vmem:[%s1442 + $0x58] sm:$0xff]
    %v1455 = vld [vmem:[%s1442 + $0x60] sm:$0xff]
    %v1456 = vld [vmem:[%s1442 + $0x68] sm:$0xff]
    %v1457 = vld [vmem:[%s1442 + $0x70] sm:$0xff]
    %v1458 = vld [vmem:[%s1442 + $0x78] sm:$0xff]
    %1459 = vmatprep.subr.mxu0 0.0
    %v1460 = vand.u32 %v1443, 4294901760
    %1461 = vmatpush1.msra.mxu0 %v1460
    %1462 = vmatprep.subr.mxu0 0.0
    %v1463 = vand.u32 %v1444, 4294901760
    %1464 = vmatpush1.msra.mxu0 %v1463
    %1465 = vmatprep.subr.mxu0 0.0
    %v1466 = vand.u32 %v1445, 4294901760
    %1467 = vmatpush1.msra.mxu0 %v1466
    %1468 = vmatprep.subr.mxu0 0.0
    %v1469 = vand.u32 %v1446, 4294901760
    %1470 = vmatpush1.msra.mxu0 %v1469
    %1471 = vmatprep.subr.mxu0 0.0
    %v1472 = vand.u32 %v1447, 4294901760
    %1473 = vmatpush1.msra.mxu0 %v1472
    %1474 = vmatprep.subr.mxu0 0.0
    %v1475 = vand.u32 %v1448, 4294901760
    %1476 = vmatpush1.msra.mxu0 %v1475
    %1477 = vmatprep.subr.mxu0 0.0
    %v1478 = vand.u32 %v1449, 4294901760
    %1479 = vmatpush1.msra.mxu0 %v1478
    %1480 = vmatprep.subr.mxu0 0.0
    %v1481 = vand.u32 %v1450, 4294901760
    %1482 = vmatpush1.msra.mxu0 %v1481
    %1483 = vmatprep.subr.mxu0 0.0
    %v1484 = vand.u32 %v1451, 4294901760
    %1485 = vmatpush1.msra.mxu0 %v1484
    %1486 = vmatprep.subr.mxu0 0.0
    %v1487 = vand.u32 %v1452, 4294901760
    %1488 = vmatpush1.msra.mxu0 %v1487
    %1489 = vmatprep.subr.mxu0 0.0
    %v1490 = vand.u32 %v1453, 4294901760
    %1491 = vmatpush1.msra.mxu0 %v1490
    %1492 = vmatprep.subr.mxu0 0.0
    %v1493 = vand.u32 %v1454, 4294901760
    %1494 = vmatpush1.msra.mxu0 %v1493
    %1495 = vmatprep.subr.mxu0 0.0
    %v1496 = vand.u32 %v1455, 4294901760
    %1497 = vmatpush1.msra.mxu0 %v1496
    %1498 = vmatprep.subr.mxu0 0.0
    %v1499 = vand.u32 %v1456, 4294901760
    %1500 = vmatpush1.msra.mxu0 %v1499
    %1501 = vmatprep.subr.mxu0 0.0
    %v1502 = vand.u32 %v1457, 4294901760
    %1503 = vmatpush1.msra.mxu0 %v1502
    %1504 = vmatprep.subr.mxu0 0.0
    %v1505 = vand.u32 %v1458, 4294901760
    %1506 = vmatpush1.msra.mxu0 %v1505
    %1507 = vmatprep.subr.mxu0 0.0
    %1508 = vmatpush1.msra.mxu0 0.0
    %1509 = vmatprep.subr.mxu0 0.0
    %1510 = vmatpush1.msra.mxu0 0.0
    %1511 = vmatprep.subr.mxu0 0.0
    %1512 = vmatpush1.msra.mxu0 0.0
    %1513 = vmatprep.subr.mxu0 0.0
    %1514 = vmatpush1.msra.mxu0 0.0
    %1515 = vmatprep.subr.mxu0 0.0
    %1516 = vmatpush1.msra.mxu0 0.0
    %1517 = vmatprep.subr.mxu0 0.0
    %1518 = vmatpush1.msra.mxu0 0.0
    %1519 = vmatprep.subr.mxu0 0.0
    %1520 = vmatpush1.msra.mxu0 0.0
    %1521 = vmatprep.subr.mxu0 0.0
    %1522 = vmatpush1.msra.mxu0 0.0
    %1523 = vmatprep.subr.mxu0 0.0
    %1524 = vmatpush1.msra.mxu0 0.0
    %1525 = vmatprep.subr.mxu0 0.0
    %1526 = vmatpush1.msra.mxu0 0.0
    %1527 = vmatprep.subr.mxu0 0.0
    %1528 = vmatpush1.msra.mxu0 0.0
    %1529 = vmatprep.subr.mxu0 0.0
    %1530 = vmatpush1.msra.mxu0 0.0
    %1531 = vmatprep.subr.mxu0 0.0
    %1532 = vmatpush1.msra.mxu0 0.0
    %1533 = vmatprep.subr.mxu0 0.0
    %1534 = vmatpush1.msra.mxu0 0.0
    %1535 = vmatprep.subr.mxu0 0.0
    %1536 = vmatpush1.msra.mxu0 0.0
    %1537 = vmatprep.subr.mxu0 0.0
    %1538 = vmatpush1.msra.mxu0 0.0
    %1539 = vmatprep.mubr.f32.mxu0 0.0
    %v1540 = vand.u32 %v126, 4294901760
    %v1541 = vsub.f32 %v126, %v1540
    %v1542 = vand.u32 %v1541, 4294901760
    %v1543 = vsub.f32 %v1541, %v1542
    %v1544 = vand.u32 %v1543, 4294901760
    %1545 = vmatmul.mubr.f32.gmra.mrb[0].mxu0 %v1544
    %v1546 = vpop.f32.mrb[0].mxu0
    %v1547 = vadd.f32 0.0, %v1546
    %v1548 = vpop.f32.mrb[0].mxu0
    %1549 = vdwg.mxu0
    %1550 = vmatprep.subr.mxu0 0.0
    %v1551 = vand.u32 %v1443, 4294901760
    %v1552 = vsub.f32 %v1443, %v1551
    %v1553 = vand.u32 %v1552, 4294901760
    %v1554 = vsub.f32 %v1552, %v1553
    %v1555 = vand.u32 %v1554, 4294901760
    %1556 = vmatpush1.msra.mxu0 %v1555
    %1557 = vmatprep.subr.mxu0 0.0
    %v1558 = vand.u32 %v1444, 4294901760
    %v1559 = vsub.f32 %v1444, %v1558
    %v1560 = vand.u32 %v1559, 4294901760
    %v1561 = vsub.f32 %v1559, %v1560
    %v1562 = vand.u32 %v1561, 4294901760
    %1563 = vmatpush1.msra.mxu0 %v1562
    %1564 = vmatprep.subr.mxu0 0.0
    %v1565 = vand.u32 %v1445, 4294901760
    %v1566 = vsub.f32 %v1445, %v1565
    %v1567 = vand.u32 %v1566, 4294901760
    %v1568 = vsub.f32 %v1566, %v1567
    %v1569 = vand.u32 %v1568, 4294901760
    %1570 = vmatpush1.msra.mxu0 %v1569
    %1571 = vmatprep.subr.mxu0 0.0
    %v1572 = vand.u32 %v1446, 4294901760
    %v1573 = vsub.f32 %v1446, %v1572
    %v1574 = vand.u32 %v1573, 4294901760
    %v1575 = vsub.f32 %v1573, %v1574
    %v1576 = vand.u32 %v1575, 4294901760
    %1577 = vmatpush1.msra.mxu0 %v1576
    %1578 = vmatprep.subr.mxu0 0.0
    %v1579 = vand.u32 %v1447, 4294901760
    %v1580 = vsub.f32 %v1447, %v1579
    %v1581 = vand.u32 %v1580, 4294901760
    %v1582 = vsub.f32 %v1580, %v1581
    %v1583 = vand.u32 %v1582, 4294901760
    %1584 = vmatpush1.msra.mxu0 %v1583
    %1585 = vmatprep.subr.mxu0 0.0
    %v1586 = vand.u32 %v1448, 4294901760
    %v1587 = vsub.f32 %v1448, %v1586
    %v1588 = vand.u32 %v1587, 4294901760
    %v1589 = vsub.f32 %v1587, %v1588
    %v1590 = vand.u32 %v1589, 4294901760
    %1591 = vmatpush1.msra.mxu0 %v1590
    %1592 = vmatprep.subr.mxu0 0.0
    %v1593 = vand.u32 %v1449, 4294901760
    %v1594 = vsub.f32 %v1449, %v1593
    %v1595 = vand.u32 %v1594, 4294901760
    %v1596 = vsub.f32 %v1594, %v1595
    %v1597 = vand.u32 %v1596, 4294901760
    %1598 = vmatpush1.msra.mxu0 %v1597
    %1599 = vmatprep.subr.mxu0 0.0
    %v1600 = vand.u32 %v1450, 4294901760
    %v1601 = vsub.f32 %v1450, %v1600
    %v1602 = vand.u32 %v1601, 4294901760
    %v1603 = vsub.f32 %v1601, %v1602
    %v1604 = vand.u32 %v1603, 4294901760
    %1605 = vmatpush1.msra.mxu0 %v1604
    %1606 = vmatprep.subr.mxu0 0.0
    %v1607 = vand.u32 %v1451, 4294901760
    %v1608 = vsub.f32 %v1451, %v1607
    %v1609 = vand.u32 %v1608, 4294901760
    %v1610 = vsub.f32 %v1608, %v1609
    %v1611 = vand.u32 %v1610, 4294901760
    %1612 = vmatpush1.msra.mxu0 %v1611
    %1613 = vmatprep.subr.mxu0 0.0
    %v1614 = vand.u32 %v1452, 4294901760
    %v1615 = vsub.f32 %v1452, %v1614
    %v1616 = vand.u32 %v1615, 4294901760
    %v1617 = vsub.f32 %v1615, %v1616
    %v1618 = vand.u32 %v1617, 4294901760
    %1619 = vmatpush1.msra.mxu0 %v1618
    %1620 = vmatprep.subr.mxu0 0.0
    %v1621 = vand.u32 %v1453, 4294901760
    %v1622 = vsub.f32 %v1453, %v1621
    %v1623 = vand.u32 %v1622, 4294901760
    %v1624 = vsub.f32 %v1622, %v1623
    %v1625 = vand.u32 %v1624, 4294901760
    %1626 = vmatpush1.msra.mxu0 %v1625
    %1627 = vmatprep.subr.mxu0 0.0
    %v1628 = vand.u32 %v1454, 4294901760
    %v1629 = vsub.f32 %v1454, %v1628
    %v1630 = vand.u32 %v1629, 4294901760
    %v1631 = vsub.f32 %v1629, %v1630
    %v1632 = vand.u32 %v1631, 4294901760
    %1633 = vmatpush1.msra.mxu0 %v1632
    %1634 = vmatprep.subr.mxu0 0.0
    %v1635 = vand.u32 %v1455, 4294901760
    %v1636 = vsub.f32 %v1455, %v1635
    %v1637 = vand.u32 %v1636, 4294901760
    %v1638 = vsub.f32 %v1636, %v1637
    %v1639 = vand.u32 %v1638, 4294901760
    %1640 = vmatpush1.msra.mxu0 %v1639
    %1641 = vmatprep.subr.mxu0 0.0
    %v1642 = vand.u32 %v1456, 4294901760
    %v1643 = vsub.f32 %v1456, %v1642
    %v1644 = vand.u32 %v1643, 4294901760
    %v1645 = vsub.f32 %v1643, %v1644
    %v1646 = vand.u32 %v1645, 4294901760
    %1647 = vmatpush1.msra.mxu0 %v1646
    %1648 = vmatprep.subr.mxu0 0.0
    %v1649 = vand.u32 %v1457, 4294901760
    %v1650 = vsub.f32 %v1457, %v1649
    %v1651 = vand.u32 %v1650, 4294901760
    %v1652 = vsub.f32 %v1650, %v1651
    %v1653 = vand.u32 %v1652, 4294901760
    %1654 = vmatpush1.msra.mxu0 %v1653
    %1655 = vmatprep.subr.mxu0 0.0
    %v1656 = vand.u32 %v1458, 4294901760
    %v1657 = vsub.f32 %v1458, %v1656
    %v1658 = vand.u32 %v1657, 4294901760
    %v1659 = vsub.f32 %v1657, %v1658
    %v1660 = vand.u32 %v1659, 4294901760
    %1661 = vmatpush1.msra.mxu0 %v1660
    %1662 = vmatprep.subr.mxu0 0.0
    %1663 = vmatpush1.msra.mxu0 0.0
    %1664 = vmatprep.subr.mxu0 0.0
    %1665 = vmatpush1.msra.mxu0 0.0
    %1666 = vmatprep.subr.mxu0 0.0
    %1667 = vmatpush1.msra.mxu0 0.0
    %1668 = vmatprep.subr.mxu0 0.0
    %1669 = vmatpush1.msra.mxu0 0.0
    %1670 = vmatprep.subr.mxu0 0.0
    %1671 = vmatpush1.msra.mxu0 0.0
    %1672 = vmatprep.subr.mxu0 0.0
    %1673 = vmatpush1.msra.mxu0 0.0
    %1674 = vmatprep.subr.mxu0 0.0
    %1675 = vmatpush1.msra.mxu0 0.0
    %1676 = vmatprep.subr.mxu0 0.0
    %1677 = vmatpush1.msra.mxu0 0.0
    %1678 = vmatprep.subr.mxu0 0.0
    %1679 = vmatpush1.msra.mxu0 0.0
    %1680 = vmatprep.subr.mxu0 0.0
    %1681 = vmatpush1.msra.mxu0 0.0
    %1682 = vmatprep.subr.mxu0 0.0
    %1683 = vmatpush1.msra.mxu0 0.0
    %1684 = vmatprep.subr.mxu0 0.0
    %1685 = vmatpush1.msra.mxu0 0.0
    %1686 = vmatprep.subr.mxu0 0.0
    %1687 = vmatpush1.msra.mxu0 0.0
    %1688 = vmatprep.subr.mxu0 0.0
    %1689 = vmatpush1.msra.mxu0 0.0
    %1690 = vmatprep.subr.mxu0 0.0
    %1691 = vmatpush1.msra.mxu0 0.0
    %1692 = vmatprep.subr.mxu0 0.0
    %1693 = vmatpush1.msra.mxu0 0.0
    %1694 = vmatprep.mubr.f32.mxu0 0.0
    %v1695 = vand.u32 %v126, 4294901760
    %1696 = vmatmul.mubr.f32.gmra.mrb[0].mxu0 %v1695
    %v1697 = vpop.f32.mrb[0].mxu0
    %v1698 = vadd.f32 %v1547, %v1697
    %v1699 = vpop.f32.mrb[0].mxu0
    %1700 = vdwg.mxu0
    %1701 = vmatprep.subr.mxu0 0.0
    %v1702 = vand.u32 %v1443, 4294901760
    %v1703 = vsub.f32 %v1443, %v1702
    %1704 = vmatpush1.msra.mxu0 %v1703
    %1705 = vmatprep.subr.mxu0 0.0
    %v1706 = vand.u32 %v1444, 4294901760
    %v1707 = vsub.f32 %v1444, %v1706
    %1708 = vmatpush1.msra.mxu0 %v1707
    %1709 = vmatprep.subr.mxu0 0.0
    %v1710 = vand.u32 %v1445, 4294901760
    %v1711 = vsub.f32 %v1445, %v1710
    %1712 = vmatpush1.msra.mxu0 %v1711
    %1713 = vmatprep.subr.mxu0 0.0
    %v1714 = vand.u32 %v1446, 4294901760
    %v1715 = vsub.f32 %v1446, %v1714
    %1716 = vmatpush1.msra.mxu0 %v1715
    %1717 = vmatprep.subr.mxu0 0.0
    %v1718 = vand.u32 %v1447, 4294901760
    %v1719 = vsub.f32 %v1447, %v1718
    %1720 = vmatpush1.msra.mxu0 %v1719
    %1721 = vmatprep.subr.mxu0 0.0
    %v1722 = vand.u32 %v1448, 4294901760
    %v1723 = vsub.f32 %v1448, %v1722
    %1724 = vmatpush1.msra.mxu0 %v1723
    %1725 = vmatprep.subr.mxu0 0.0
    %v1726 = vand.u32 %v1449, 4294901760
    %v1727 = vsub.f32 %v1449, %v1726
    %1728 = vmatpush1.msra.mxu0 %v1727
    %1729 = vmatprep.subr.mxu0 0.0
    %v1730 = vand.u32 %v1450, 4294901760
    %v1731 = vsub.f32 %v1450, %v1730
    %1732 = vmatpush1.msra.mxu0 %v1731
    %1733 = vmatprep.subr.mxu0 0.0
    %v1734 = vand.u32 %v1451, 4294901760
    %v1735 = vsub.f32 %v1451, %v1734
    %1736 = vmatpush1.msra.mxu0 %v1735
    %1737 = vmatprep.subr.mxu0 0.0
    %v1738 = vand.u32 %v1452, 4294901760
    %v1739 = vsub.f32 %v1452, %v1738
    %1740 = vmatpush1.msra.mxu0 %v1739
    %1741 = vmatprep.subr.mxu0 0.0
    %v1742 = vand.u32 %v1453, 4294901760
    %v1743 = vsub.f32 %v1453, %v1742
    %1744 = vmatpush1.msra.mxu0 %v1743
    %1745 = vmatprep.subr.mxu0 0.0
    %v1746 = vand.u32 %v1454, 4294901760
    %v1747 = vsub.f32 %v1454, %v1746
    %1748 = vmatpush1.msra.mxu0 %v1747
    %1749 = vmatprep.subr.mxu0 0.0
    %v1750 = vand.u32 %v1455, 4294901760
    %v1751 = vsub.f32 %v1455, %v1750
    %1752 = vmatpush1.msra.mxu0 %v1751
    %1753 = vmatprep.subr.mxu0 0.0
    %v1754 = vand.u32 %v1456, 4294901760
    %v1755 = vsub.f32 %v1456, %v1754
    %1756 = vmatpush1.msra.mxu0 %v1755
    %1757 = vmatprep.subr.mxu0 0.0
    %v1758 = vand.u32 %v1457, 4294901760
    %v1759 = vsub.f32 %v1457, %v1758
    %1760 = vmatpush1.msra.mxu0 %v1759
    %1761 = vmatprep.subr.mxu0 0.0
    %v1762 = vand.u32 %v1458, 4294901760
    %v1763 = vsub.f32 %v1458, %v1762
    %1764 = vmatpush1.msra.mxu0 %v1763
    %1765 = vmatprep.subr.mxu0 0.0
    %1766 = vmatpush1.msra.mxu0 0.0
    %1767 = vmatprep.subr.mxu0 0.0
    %1768 = vmatpush1.msra.mxu0 0.0
    %1769 = vmatprep.subr.mxu0 0.0
    %1770 = vmatpush1.msra.mxu0 0.0
    %1771 = vmatprep.subr.mxu0 0.0
    %1772 = vmatpush1.msra.mxu0 0.0
    %1773 = vmatprep.subr.mxu0 0.0
    %1774 = vmatpush1.msra.mxu0 0.0
    %1775 = vmatprep.subr.mxu0 0.0
    %1776 = vmatpush1.msra.mxu0 0.0
    %1777 = vmatprep.subr.mxu0 0.0
    %1778 = vmatpush1.msra.mxu0 0.0
    %1779 = vmatprep.subr.mxu0 0.0
    %1780 = vmatpush1.msra.mxu0 0.0
    %1781 = vmatprep.subr.mxu0 0.0
    %1782 = vmatpush1.msra.mxu0 0.0
    %1783 = vmatprep.subr.mxu0 0.0
    %1784 = vmatpush1.msra.mxu0 0.0
    %1785 = vmatprep.subr.mxu0 0.0
    %1786 = vmatpush1.msra.mxu0 0.0
    %1787 = vmatprep.subr.mxu0 0.0
    %1788 = vmatpush1.msra.mxu0 0.0
    %1789 = vmatprep.subr.mxu0 0.0
    %1790 = vmatpush1.msra.mxu0 0.0
    %1791 = vmatprep.subr.mxu0 0.0
    %1792 = vmatpush1.msra.mxu0 0.0
    %1793 = vmatprep.subr.mxu0 0.0
    %1794 = vmatpush1.msra.mxu0 0.0
    %1795 = vmatprep.subr.mxu0 0.0
    %1796 = vmatpush1.msra.mxu0 0.0
    %1797 = vmatprep.mubr.f32.mxu0 0.0
    %v1798 = vand.u32 %v126, 4294901760
    %v1799 = vsub.f32 %v126, %v1798
    %1800 = vmatmul.mubr.f32.gmra.mrb[0].mxu0 %v1799
    %v1801 = vpop.f32.mrb[0].mxu0
    %v1802 = vadd.f32 %v1698, %v1801
    %v1803 = vpop.f32.mrb[0].mxu0
    %1804 = vdwg.mxu0
    %1805 = vmatprep.subr.mxu0 0.0
    %v1806 = vand.u32 %v1443, 4294901760
    %1807 = vmatpush1.msra.mxu0 %v1806
    %1808 = vmatprep.subr.mxu0 0.0
    %v1809 = vand.u32 %v1444, 4294901760
    %1810 = vmatpush1.msra.mxu0 %v1809
    %1811 = vmatprep.subr.mxu0 0.0
    %v1812 = vand.u32 %v1445, 4294901760
    %1813 = vmatpush1.msra.mxu0 %v1812
    %1814 = vmatprep.subr.mxu0 0.0
    %v1815 = vand.u32 %v1446, 4294901760
    %1816 = vmatpush1.msra.mxu0 %v1815
    %1817 = vmatprep.subr.mxu0 0.0
    %v1818 = vand.u32 %v1447, 4294901760
    %1819 = vmatpush1.msra.mxu0 %v1818
    %1820 = vmatprep.subr.mxu0 0.0
    %v1821 = vand.u32 %v1448, 4294901760
    %1822 = vmatpush1.msra.mxu0 %v1821
    %1823 = vmatprep.subr.mxu0 0.0
    %v1824 = vand.u32 %v1449, 4294901760
    %1825 = vmatpush1.msra.mxu0 %v1824
    %1826 = vmatprep.subr.mxu0 0.0
    %v1827 = vand.u32 %v1450, 4294901760
    %1828 = vmatpush1.msra.mxu0 %v1827
    %1829 = vmatprep.subr.mxu0 0.0
    %v1830 = vand.u32 %v1451, 4294901760
    %1831 = vmatpush1.msra.mxu0 %v1830
    %1832 = vmatprep.subr.mxu0 0.0
    %v1833 = vand.u32 %v1452, 4294901760
    %1834 = vmatpush1.msra.mxu0 %v1833
    %1835 = vmatprep.subr.mxu0 0.0
    %v1836 = vand.u32 %v1453, 4294901760
    %1837 = vmatpush1.msra.mxu0 %v1836
    %1838 = vmatprep.subr.mxu0 0.0
    %v1839 = vand.u32 %v1454, 4294901760
    %1840 = vmatpush1.msra.mxu0 %v1839
    %1841 = vmatprep.subr.mxu0 0.0
    %v1842 = vand.u32 %v1455, 4294901760
    %1843 = vmatpush1.msra.mxu0 %v1842
    %1844 = vmatprep.subr.mxu0 0.0
    %v1845 = vand.u32 %v1456, 4294901760
    %1846 = vmatpush1.msra.mxu0 %v1845
    %1847 = vmatprep.subr.mxu0 0.0
    %v1848 = vand.u32 %v1457, 4294901760
    %1849 = vmatpush1.msra.mxu0 %v1848
    %1850 = vmatprep.subr.mxu0 0.0
    %v1851 = vand.u32 %v1458, 4294901760
    %1852 = vmatpush1.msra.mxu0 %v1851
    %1853 = vmatprep.subr.mxu0 0.0
    %1854 = vmatpush1.msra.mxu0 0.0
    %1855 = vmatprep.subr.mxu0 0.0
    %1856 = vmatpush1.msra.mxu0 0.0
    %1857 = vmatprep.subr.mxu0 0.0
    %1858 = vmatpush1.msra.mxu0 0.0
    %1859 = vmatprep.subr.mxu0 0.0
    %1860 = vmatpush1.msra.mxu0 0.0
    %1861 = vmatprep.subr.mxu0 0.0
    %1862 = vmatpush1.msra.mxu0 0.0
    %1863 = vmatprep.subr.mxu0 0.0
    %1864 = vmatpush1.msra.mxu0 0.0
    %1865 = vmatprep.subr.mxu0 0.0
    %1866 = vmatpush1.msra.mxu0 0.0
    %1867 = vmatprep.subr.mxu0 0.0
    %1868 = vmatpush1.msra.mxu0 0.0
    %1869 = vmatprep.subr.mxu0 0.0
    %1870 = vmatpush1.msra.mxu0 0.0
    %1871 = vmatprep.subr.mxu0 0.0
    %1872 = vmatpush1.msra.mxu0 0.0
    %1873 = vmatprep.subr.mxu0 0.0
    %1874 = vmatpush1.msra.mxu0 0.0
    %1875 = vmatprep.subr.mxu0 0.0
    %1876 = vmatpush1.msra.mxu0 0.0
    %1877 = vmatprep.subr.mxu0 0.0
    %1878 = vmatpush1.msra.mxu0 0.0
    %1879 = vmatprep.subr.mxu0 0.0
    %1880 = vmatpush1.msra.mxu0 0.0
    %1881 = vmatprep.subr.mxu0 0.0
    %1882 = vmatpush1.msra.mxu0 0.0
    %1883 = vmatprep.subr.mxu0 0.0
    %1884 = vmatpush1.msra.mxu0 0.0
    %1885 = vmatprep.mubr.f32.mxu0 0.0
    %v1886 = vand.u32 %v126, 4294901760
    %v1887 = vsub.f32 %v126, %v1886
    %v1888 = vand.u32 %v1887, 4294901760
    %1889 = vmatmul.mubr.f32.gmra.mrb[0].mxu0 %v1888
    %v1890 = vpop.f32.mrb[0].mxu0
    %v1891 = vadd.f32 %v1802, %v1890
    %v1892 = vpop.f32.mrb[0].mxu0
    %1893 = vdwg.mxu0
    %1894 = vmatprep.subr.mxu0 0.0
    %v1895 = vand.u32 %v1443, 4294901760
    %v1896 = vsub.f32 %v1443, %v1895
    %v1897 = vand.u32 %v1896, 4294901760
    %1898 = vmatpush1.msra.mxu0 %v1897
    %1899 = vmatprep.subr.mxu0 0.0
    %v1900 = vand.u32 %v1444, 4294901760
    %v1901 = vsub.f32 %v1444, %v1900
    %v1902 = vand.u32 %v1901, 4294901760
    %1903 = vmatpush1.msra.mxu0 %v1902
    %1904 = vmatprep.subr.mxu0 0.0
    %v1905 = vand.u32 %v1445, 4294901760
    %v1906 = vsub.f32 %v1445, %v1905
    %v1907 = vand.u32 %v1906, 4294901760
    %1908 = vmatpush1.msra.mxu0 %v1907
    %1909 = vmatprep.subr.mxu0 0.0
    %v1910 = vand.u32 %v1446, 4294901760
    %v1911 = vsub.f32 %v1446, %v1910
    %v1912 = vand.u32 %v1911, 4294901760
    %1913 = vmatpush1.msra.mxu0 %v1912
    %1914 = vmatprep.subr.mxu0 0.0
    %v1915 = vand.u32 %v1447, 4294901760
    %v1916 = vsub.f32 %v1447, %v1915
    %v1917 = vand.u32 %v1916, 4294901760
    %1918 = vmatpush1.msra.mxu0 %v1917
    %1919 = vmatprep.subr.mxu0 0.0
    %v1920 = vand.u32 %v1448, 4294901760
    %v1921 = vsub.f32 %v1448, %v1920
    %v1922 = vand.u32 %v1921, 4294901760
    %1923 = vmatpush1.msra.mxu0 %v1922
    %1924 = vmatprep.subr.mxu0 0.0
    %v1925 = vand.u32 %v1449, 4294901760
    %v1926 = vsub.f32 %v1449, %v1925
    %v1927 = vand.u32 %v1926, 4294901760
    %1928 = vmatpush1.msra.mxu0 %v1927
    %1929 = vmatprep.subr.mxu0 0.0
    %v1930 = vand.u32 %v1450, 4294901760
    %v1931 = vsub.f32 %v1450, %v1930
    %v1932 = vand.u32 %v1931, 4294901760
    %1933 = vmatpush1.msra.mxu0 %v1932
    %1934 = vmatprep.subr.mxu0 0.0
    %v1935 = vand.u32 %v1451, 4294901760
    %v1936 = vsub.f32 %v1451, %v1935
    %v1937 = vand.u32 %v1936, 4294901760
    %1938 = vmatpush1.msra.mxu0 %v1937
    %1939 = vmatprep.subr.mxu0 0.0
    %v1940 = vand.u32 %v1452, 4294901760
    %v1941 = vsub.f32 %v1452, %v1940
    %v1942 = vand.u32 %v1941, 4294901760
    %1943 = vmatpush1.msra.mxu0 %v1942
    %1944 = vmatprep.subr.mxu0 0.0
    %v1945 = vand.u32 %v1453, 4294901760
    %v1946 = vsub.f32 %v1453, %v1945
    %v1947 = vand.u32 %v1946, 4294901760
    %1948 = vmatpush1.msra.mxu0 %v1947
    %1949 = vmatprep.subr.mxu0 0.0
    %v1950 = vand.u32 %v1454, 4294901760
    %v1951 = vsub.f32 %v1454, %v1950
    %v1952 = vand.u32 %v1951, 4294901760
    %1953 = vmatpush1.msra.mxu0 %v1952
    %1954 = vmatprep.subr.mxu0 0.0
    %v1955 = vand.u32 %v1455, 4294901760
    %v1956 = vsub.f32 %v1455, %v1955
    %v1957 = vand.u32 %v1956, 4294901760
    %1958 = vmatpush1.msra.mxu0 %v1957
    %1959 = vmatprep.subr.mxu0 0.0
    %v1960 = vand.u32 %v1456, 4294901760
    %v1961 = vsub.f32 %v1456, %v1960
    %v1962 = vand.u32 %v1961, 4294901760
    %1963 = vmatpush1.msra.mxu0 %v1962
    %1964 = vmatprep.subr.mxu0 0.0
    %v1965 = vand.u32 %v1457, 4294901760
    %v1966 = vsub.f32 %v1457, %v1965
    %v1967 = vand.u32 %v1966, 4294901760
    %1968 = vmatpush1.msra.mxu0 %v1967
    %1969 = vmatprep.subr.mxu0 0.0
    %v1970 = vand.u32 %v1458, 4294901760
    %v1971 = vsub.f32 %v1458, %v1970
    %v1972 = vand.u32 %v1971, 4294901760
    %1973 = vmatpush1.msra.mxu0 %v1972
    %1974 = vmatprep.subr.mxu0 0.0
    %1975 = vmatpush1.msra.mxu0 0.0
    %1976 = vmatprep.subr.mxu0 0.0
    %1977 = vmatpush1.msra.mxu0 0.0
    %1978 = vmatprep.subr.mxu0 0.0
    %1979 = vmatpush1.msra.mxu0 0.0
    %1980 = vmatprep.subr.mxu0 0.0
    %1981 = vmatpush1.msra.mxu0 0.0
    %1982 = vmatprep.subr.mxu0 0.0
    %1983 = vmatpush1.msra.mxu0 0.0
    %1984 = vmatprep.subr.mxu0 0.0
    %1985 = vmatpush1.msra.mxu0 0.0
    %1986 = vmatprep.subr.mxu0 0.0
    %1987 = vmatpush1.msra.mxu0 0.0
    %1988 = vmatprep.subr.mxu0 0.0
    %1989 = vmatpush1.msra.mxu0 0.0
    %1990 = vmatprep.subr.mxu0 0.0
    %1991 = vmatpush1.msra.mxu0 0.0
    %1992 = vmatprep.subr.mxu0 0.0
    %1993 = vmatpush1.msra.mxu0 0.0
    %1994 = vmatprep.subr.mxu0 0.0
    %1995 = vmatpush1.msra.mxu0 0.0
    %1996 = vmatprep.subr.mxu0 0.0
    %1997 = vmatpush1.msra.mxu0 0.0
    %1998 = vmatprep.subr.mxu0 0.0
    %1999 = vmatpush1.msra.mxu0 0.0
    %2000 = vmatprep.subr.mxu0 0.0
    %2001 = vmatpush1.msra.mxu0 0.0
    %2002 = vmatprep.subr.mxu0 0.0
    %2003 = vmatpush1.msra.mxu0 0.0
    %2004 = vmatprep.subr.mxu0 0.0
    %2005 = vmatpush1.msra.mxu0 0.0
    %2006 = vmatprep.mubr.f32.mxu0 0.0
    %v2007 = vand.u32 %v126, 4294901760
    %2008 = vmatmul.mubr.f32.gmra.mrb[0].mxu0 %v2007
    %v2009 = vpop.f32.mrb[0].mxu0
    %v2010 = vadd.f32 %v1891, %v2009
    %v2011 = vpop.f32.mrb[0].mxu0
    %2012 = vdwg.mxu0
    %2013 = vmatprep.subr.mxu0 0.0
    %v2014 = vand.u32 %v1443, 4294901760
    %2015 = vmatpush1.msra.mxu0 %v2014
    %2016 = vmatprep.subr.mxu0 0.0
    %v2017 = vand.u32 %v1444, 4294901760
    %2018 = vmatpush1.msra.mxu0 %v2017
    %2019 = vmatprep.subr.mxu0 0.0
    %v2020 = vand.u32 %v1445, 4294901760
    %2021 = vmatpush1.msra.mxu0 %v2020
    %2022 = vmatprep.subr.mxu0 0.0
    %v2023 = vand.u32 %v1446, 4294901760
    %2024 = vmatpush1.msra.mxu0 %v2023
    %2025 = vmatprep.subr.mxu0 0.0
    %v2026 = vand.u32 %v1447, 4294901760
    %2027 = vmatpush1.msra.mxu0 %v2026
    %2028 = vmatprep.subr.mxu0 0.0
    %v2029 = vand.u32 %v1448, 4294901760
    %2030 = vmatpush1.msra.mxu0 %v2029
    %2031 = vmatprep.subr.mxu0 0.0
    %v2032 = vand.u32 %v1449, 4294901760
    %2033 = vmatpush1.msra.mxu0 %v2032
    %2034 = vmatprep.subr.mxu0 0.0
    %v2035 = vand.u32 %v1450, 4294901760
    %2036 = vmatpush1.msra.mxu0 %v2035
    %2037 = vmatprep.subr.mxu0 0.0
    %v2038 = vand.u32 %v1451, 4294901760
    %2039 = vmatpush1.msra.mxu0 %v2038
    %2040 = vmatprep.subr.mxu0 0.0
    %v2041 = vand.u32 %v1452, 4294901760
    %2042 = vmatpush1.msra.mxu0 %v2041
    %2043 = vmatprep.subr.mxu0 0.0
    %v2044 = vand.u32 %v1453, 4294901760
    %2045 = vmatpush1.msra.mxu0 %v2044
    %2046 = vmatprep.subr.mxu0 0.0
    %v2047 = vand.u32 %v1454, 4294901760
    %2048 = vmatpush1.msra.mxu0 %v2047
    %2049 = vmatprep.subr.mxu0 0.0
    %v2050 = vand.u32 %v1455, 4294901760
    %2051 = vmatpush1.msra.mxu0 %v2050
    %2052 = vmatprep.subr.mxu0 0.0
    %v2053 = vand.u32 %v1456, 4294901760
    %2054 = vmatpush1.msra.mxu0 %v2053
    %2055 = vmatprep.subr.mxu0 0.0
    %v2056 = vand.u32 %v1457, 4294901760
    %2057 = vmatpush1.msra.mxu0 %v2056
    %2058 = vmatprep.subr.mxu0 0.0
    %v2059 = vand.u32 %v1458, 4294901760
    %2060 = vmatpush1.msra.mxu0 %v2059
    %2061 = vmatprep.subr.mxu0 0.0
    %2062 = vmatpush1.msra.mxu0 0.0
    %2063 = vmatprep.subr.mxu0 0.0
    %2064 = vmatpush1.msra.mxu0 0.0
    %2065 = vmatprep.subr.mxu0 0.0
    %2066 = vmatpush1.msra.mxu0 0.0
    %2067 = vmatprep.subr.mxu0 0.0
    %2068 = vmatpush1.msra.mxu0 0.0
    %2069 = vmatprep.subr.mxu0 0.0
    %2070 = vmatpush1.msra.mxu0 0.0
    %2071 = vmatprep.subr.mxu0 0.0
    %2072 = vmatpush1.msra.mxu0 0.0
    %2073 = vmatprep.subr.mxu0 0.0
    %2074 = vmatpush1.msra.mxu0 0.0
    %2075 = vmatprep.subr.mxu0 0.0
    %2076 = vmatpush1.msra.mxu0 0.0
    %2077 = vmatprep.subr.mxu0 0.0
    %2078 = vmatpush1.msra.mxu0 0.0
    %2079 = vmatprep.subr.mxu0 0.0
    %2080 = vmatpush1.msra.mxu0 0.0
    %2081 = vmatprep.subr.mxu0 0.0
    %2082 = vmatpush1.msra.mxu0 0.0
    %2083 = vmatprep.subr.mxu0 0.0
    %2084 = vmatpush1.msra.mxu0 0.0
    %2085 = vmatprep.subr.mxu0 0.0
    %2086 = vmatpush1.msra.mxu0 0.0
    %2087 = vmatprep.subr.mxu0 0.0
    %2088 = vmatpush1.msra.mxu0 0.0
    %2089 = vmatprep.subr.mxu0 0.0
    %2090 = vmatpush1.msra.mxu0 0.0
    %2091 = vmatprep.subr.mxu0 0.0
    %2092 = vmatpush1.msra.mxu0 0.0
    %2093 = vmatprep.mubr.f32.mxu0 0.0
    %v2094 = vand.u32 %v126, 4294901760
    %2095 = vmatmul.mubr.f32.gmra.mrb[0].mxu0 %v2094
    %v2096 = vpop.f32.mrb[0].mxu0
    %v2097 = vadd.f32 %v2010, %v2096
    %v2098 = vpop.f32.mrb[0].mxu0
    %2099 = vdwg.mxu0
    %s2100 = scalar_lea.vmem %s2, 384
    %v2101 = vld [vmem:[%s2100] sm:$0xff]
    %v2102 = vld [vmem:[%s2100 + $0x8] sm:$0xff]
    %v2103 = vld [vmem:[%s2100 + $0x10] sm:$0xff]
    %v2104 = vld [vmem:[%s2100 + $0x18] sm:$0xff]
    %v2105 = vld [vmem:[%s2100 + $0x20] sm:$0xff]
    %v2106 = vld [vmem:[%s2100 + $0x28] sm:$0xff]
    %v2107 = vld [vmem:[%s2100 + $0x30] sm:$0xff]
    %v2108 = vld [vmem:[%s2100 + $0x38] sm:$0xff]
    %v2109 = vld [vmem:[%s2100 + $0x40] sm:$0xff]
    %v2110 = vld [vmem:[%s2100 + $0x48] sm:$0xff]
    %v2111 = vld [vmem:[%s2100 + $0x50] sm:$0xff]
    %v2112 = vld [vmem:[%s2100 + $0x58] sm:$0xff]
    %v2113 = vld [vmem:[%s2100 + $0x60] sm:$0xff]
    %v2114 = vld [vmem:[%s2100 + $0x68] sm:$0xff]
    %v2115 = vld [vmem:[%s2100 + $0x70] sm:$0xff]
    %v2116 = vld [vmem:[%s2100 + $0x78] sm:$0xff]
    %2117 = vmatprep.subr.mxu0 0.0
    %v2118 = vand.u32 %v2101, 4294901760
    %2119 = vmatpush1.msra.mxu0 %v2118
    %2120 = vmatprep.subr.mxu0 0.0
    %v2121 = vand.u32 %v2102, 4294901760
    %2122 = vmatpush1.msra.mxu0 %v2121
    %2123 = vmatprep.subr.mxu0 0.0
    %v2124 = vand.u32 %v2103, 4294901760
    %2125 = vmatpush1.msra.mxu0 %v2124
    %2126 = vmatprep.subr.mxu0 0.0
    %v2127 = vand.u32 %v2104, 4294901760
    %2128 = vmatpush1.msra.mxu0 %v2127
    %2129 = vmatprep.subr.mxu0 0.0
    %v2130 = vand.u32 %v2105, 4294901760
    %2131 = vmatpush1.msra.mxu0 %v2130
    %2132 = vmatprep.subr.mxu0 0.0
    %v2133 = vand.u32 %v2106, 4294901760
    %2134 = vmatpush1.msra.mxu0 %v2133
    %2135 = vmatprep.subr.mxu0 0.0
    %v2136 = vand.u32 %v2107, 4294901760
    %2137 = vmatpush1.msra.mxu0 %v2136
    %2138 = vmatprep.subr.mxu0 0.0
    %v2139 = vand.u32 %v2108, 4294901760
    %2140 = vmatpush1.msra.mxu0 %v2139
    %2141 = vmatprep.subr.mxu0 0.0
    %v2142 = vand.u32 %v2109, 4294901760
    %2143 = vmatpush1.msra.mxu0 %v2142
    %2144 = vmatprep.subr.mxu0 0.0
    %v2145 = vand.u32 %v2110, 4294901760
    %2146 = vmatpush1.msra.mxu0 %v2145
    %2147 = vmatprep.subr.mxu0 0.0
    %v2148 = vand.u32 %v2111, 4294901760
    %2149 = vmatpush1.msra.mxu0 %v2148
    %2150 = vmatprep.subr.mxu0 0.0
    %v2151 = vand.u32 %v2112, 4294901760
    %2152 = vmatpush1.msra.mxu0 %v2151
    %2153 = vmatprep.subr.mxu0 0.0
    %v2154 = vand.u32 %v2113, 4294901760
    %2155 = vmatpush1.msra.mxu0 %v2154
    %2156 = vmatprep.subr.mxu0 0.0
    %v2157 = vand.u32 %v2114, 4294901760
    %2158 = vmatpush1.msra.mxu0 %v2157
    %2159 = vmatprep.subr.mxu0 0.0
    %v2160 = vand.u32 %v2115, 4294901760
    %2161 = vmatpush1.msra.mxu0 %v2160
    %2162 = vmatprep.subr.mxu0 0.0
    %v2163 = vand.u32 %v2116, 4294901760
    %2164 = vmatpush1.msra.mxu0 %v2163
    %2165 = vmatprep.subr.mxu0 0.0
    %2166 = vmatpush1.msra.mxu0 0.0
    %2167 = vmatprep.subr.mxu0 0.0
    %2168 = vmatpush1.msra.mxu0 0.0
    %2169 = vmatprep.subr.mxu0 0.0
    %2170 = vmatpush1.msra.mxu0 0.0
    %2171 = vmatprep.subr.mxu0 0.0
    %2172 = vmatpush1.msra.mxu0 0.0
    %2173 = vmatprep.subr.mxu0 0.0
    %2174 = vmatpush1.msra.mxu0 0.0
    %2175 = vmatprep.subr.mxu0 0.0
    %2176 = vmatpush1.msra.mxu0 0.0
    %2177 = vmatprep.subr.mxu0 0.0
    %2178 = vmatpush1.msra.mxu0 0.0
    %2179 = vmatprep.subr.mxu0 0.0
    %2180 = vmatpush1.msra.mxu0 0.0
    %2181 = vmatprep.subr.mxu0 0.0
    %2182 = vmatpush1.msra.mxu0 0.0
    %2183 = vmatprep.subr.mxu0 0.0
    %2184 = vmatpush1.msra.mxu0 0.0
    %2185 = vmatprep.subr.mxu0 0.0
    %2186 = vmatpush1.msra.mxu0 0.0
    %2187 = vmatprep.subr.mxu0 0.0
    %2188 = vmatpush1.msra.mxu0 0.0
    %2189 = vmatprep.subr.mxu0 0.0
    %2190 = vmatpush1.msra.mxu0 0.0
    %2191 = vmatprep.subr.mxu0 0.0
    %2192 = vmatpush1.msra.mxu0 0.0
    %2193 = vmatprep.subr.mxu0 0.0
    %2194 = vmatpush1.msra.mxu0 0.0
    %2195 = vmatprep.subr.mxu0 0.0
    %2196 = vmatpush1.msra.mxu0 0.0
    %2197 = vmatprep.mubr.f32.mxu0 0.0
    %v2198 = vand.u32 %v126, 4294901760
    %v2199 = vsub.f32 %v126, %v2198
    %v2200 = vand.u32 %v2199, 4294901760
    %v2201 = vsub.f32 %v2199, %v2200
    %v2202 = vand.u32 %v2201, 4294901760
    %2203 = vmatmul.mubr.f32.gmra.mrb[0].mxu0 %v2202
    %v2204 = vpop.f32.mrb[0].mxu0
    %v2205 = vadd.f32 0.0, %v2204
    %v2206 = vpop.f32.mrb[0].mxu0
    %2207 = vdwg.mxu0
    %2208 = vmatprep.subr.mxu0 0.0
    %v2209 = vand.u32 %v2101, 4294901760
    %v2210 = vsub.f32 %v2101, %v2209
    %v2211 = vand.u32 %v2210, 4294901760
    %v2212 = vsub.f32 %v2210, %v2211
    %v2213 = vand.u32 %v2212, 4294901760
    %2214 = vmatpush1.msra.mxu0 %v2213
    %2215 = vmatprep.subr.mxu0 0.0
    %v2216 = vand.u32 %v2102, 4294901760
    %v2217 = vsub.f32 %v2102, %v2216
    %v2218 = vand.u32 %v2217, 4294901760
    %v2219 = vsub.f32 %v2217, %v2218
    %v2220 = vand.u32 %v2219, 4294901760
    %2221 = vmatpush1.msra.mxu0 %v2220
    %2222 = vmatprep.subr.mxu0 0.0
    %v2223 = vand.u32 %v2103, 4294901760
    %v2224 = vsub.f32 %v2103, %v2223
    %v2225 = vand.u32 %v2224, 4294901760
    %v2226 = vsub.f32 %v2224, %v2225
    %v2227 = vand.u32 %v2226, 4294901760
    %2228 = vmatpush1.msra.mxu0 %v2227
    %2229 = vmatprep.subr.mxu0 0.0
    %v2230 = vand.u32 %v2104, 4294901760
    %v2231 = vsub.f32 %v2104, %v2230
    %v2232 = vand.u32 %v2231, 4294901760
    %v2233 = vsub.f32 %v2231, %v2232
    %v2234 = vand.u32 %v2233, 4294901760
    %2235 = vmatpush1.msra.mxu0 %v2234
    %2236 = vmatprep.subr.mxu0 0.0
    %v2237 = vand.u32 %v2105, 4294901760
    %v2238 = vsub.f32 %v2105, %v2237
    %v2239 = vand.u32 %v2238, 4294901760
    %v2240 = vsub.f32 %v2238, %v2239
    %v2241 = vand.u32 %v2240, 4294901760
    %2242 = vmatpush1.msra.mxu0 %v2241
    %2243 = vmatprep.subr.mxu0 0.0
    %v2244 = vand.u32 %v2106, 4294901760
    %v2245 = vsub.f32 %v2106, %v2244
    %v2246 = vand.u32 %v2245, 4294901760
    %v2247 = vsub.f32 %v2245, %v2246
    %v2248 = vand.u32 %v2247, 4294901760
    %2249 = vmatpush1.msra.mxu0 %v2248
    %2250 = vmatprep.subr.mxu0 0.0
    %v2251 = vand.u32 %v2107, 4294901760
    %v2252 = vsub.f32 %v2107, %v2251
    %v2253 = vand.u32 %v2252, 4294901760
    %v2254 = vsub.f32 %v2252, %v2253
    %v2255 = vand.u32 %v2254, 4294901760
    %2256 = vmatpush1.msra.mxu0 %v2255
    %2257 = vmatprep.subr.mxu0 0.0
    %v2258 = vand.u32 %v2108, 4294901760
    %v2259 = vsub.f32 %v2108, %v2258
    %v2260 = vand.u32 %v2259, 4294901760
    %v2261 = vsub.f32 %v2259, %v2260
    %v2262 = vand.u32 %v2261, 4294901760
    %2263 = vmatpush1.msra.mxu0 %v2262
    %2264 = vmatprep.subr.mxu0 0.0
    %v2265 = vand.u32 %v2109, 4294901760
    %v2266 = vsub.f32 %v2109, %v2265
    %v2267 = vand.u32 %v2266, 4294901760
    %v2268 = vsub.f32 %v2266, %v2267
    %v2269 = vand.u32 %v2268, 4294901760
    %2270 = vmatpush1.msra.mxu0 %v2269
    %2271 = vmatprep.subr.mxu0 0.0
    %v2272 = vand.u32 %v2110, 4294901760
    %v2273 = vsub.f32 %v2110, %v2272
    %v2274 = vand.u32 %v2273, 4294901760
    %v2275 = vsub.f32 %v2273, %v2274
    %v2276 = vand.u32 %v2275, 4294901760
    %2277 = vmatpush1.msra.mxu0 %v2276
    %2278 = vmatprep.subr.mxu0 0.0
    %v2279 = vand.u32 %v2111, 4294901760
    %v2280 = vsub.f32 %v2111, %v2279
    %v2281 = vand.u32 %v2280, 4294901760
    %v2282 = vsub.f32 %v2280, %v2281
    %v2283 = vand.u32 %v2282, 4294901760
    %2284 = vmatpush1.msra.mxu0 %v2283
    %2285 = vmatprep.subr.mxu0 0.0
    %v2286 = vand.u32 %v2112, 4294901760
    %v2287 = vsub.f32 %v2112, %v2286
    %v2288 = vand.u32 %v2287, 4294901760
    %v2289 = vsub.f32 %v2287, %v2288
    %v2290 = vand.u32 %v2289, 4294901760
    %2291 = vmatpush1.msra.mxu0 %v2290
    %2292 = vmatprep.subr.mxu0 0.0
    %v2293 = vand.u32 %v2113, 4294901760
    %v2294 = vsub.f32 %v2113, %v2293
    %v2295 = vand.u32 %v2294, 4294901760
    %v2296 = vsub.f32 %v2294, %v2295
    %v2297 = vand.u32 %v2296, 4294901760
    %2298 = vmatpush1.msra.mxu0 %v2297
    %2299 = vmatprep.subr.mxu0 0.0
    %v2300 = vand.u32 %v2114, 4294901760
    %v2301 = vsub.f32 %v2114, %v2300
    %v2302 = vand.u32 %v2301, 4294901760
    %v2303 = vsub.f32 %v2301, %v2302
    %v2304 = vand.u32 %v2303, 4294901760
    %2305 = vmatpush1.msra.mxu0 %v2304
    %2306 = vmatprep.subr.mxu0 0.0
    %v2307 = vand.u32 %v2115, 4294901760
    %v2308 = vsub.f32 %v2115, %v2307
    %v2309 = vand.u32 %v2308, 4294901760
    %v2310 = vsub.f32 %v2308, %v2309
    %v2311 = vand.u32 %v2310, 4294901760
    %2312 = vmatpush1.msra.mxu0 %v2311
    %2313 = vmatprep.subr.mxu0 0.0
    %v2314 = vand.u32 %v2116, 4294901760
    %v2315 = vsub.f32 %v2116, %v2314
    %v2316 = vand.u32 %v2315, 4294901760
    %v2317 = vsub.f32 %v2315, %v2316
    %v2318 = vand.u32 %v2317, 4294901760
    %2319 = vmatpush1.msra.mxu0 %v2318
    %2320 = vmatprep.subr.mxu0 0.0
    %2321 = vmatpush1.msra.mxu0 0.0
    %2322 = vmatprep.subr.mxu0 0.0
    %2323 = vmatpush1.msra.mxu0 0.0
    %2324 = vmatprep.subr.mxu0 0.0
    %2325 = vmatpush1.msra.mxu0 0.0
    %2326 = vmatprep.subr.mxu0 0.0
    %2327 = vmatpush1.msra.mxu0 0.0
    %2328 = vmatprep.subr.mxu0 0.0
    %2329 = vmatpush1.msra.mxu0 0.0
    %2330 = vmatprep.subr.mxu0 0.0
    %2331 = vmatpush1.msra.mxu0 0.0
    %2332 = vmatprep.subr.mxu0 0.0
    %2333 = vmatpush1.msra.mxu0 0.0
    %2334 = vmatprep.subr.mxu0 0.0
    %2335 = vmatpush1.msra.mxu0 0.0
    %2336 = vmatprep.subr.mxu0 0.0
    %2337 = vmatpush1.msra.mxu0 0.0
    %2338 = vmatprep.subr.mxu0 0.0
    %2339 = vmatpush1.msra.mxu0 0.0
    %2340 = vmatprep.subr.mxu0 0.0
    %2341 = vmatpush1.msra.mxu0 0.0
    %2342 = vmatprep.subr.mxu0 0.0
    %2343 = vmatpush1.msra.mxu0 0.0
    %2344 = vmatprep.subr.mxu0 0.0
    %2345 = vmatpush1.msra.mxu0 0.0
    %2346 = vmatprep.subr.mxu0 0.0
    %2347 = vmatpush1.msra.mxu0 0.0
    %2348 = vmatprep.subr.mxu0 0.0
    %2349 = vmatpush1.msra.mxu0 0.0
    %2350 = vmatprep.subr.mxu0 0.0
    %2351 = vmatpush1.msra.mxu0 0.0
    %2352 = vmatprep.mubr.f32.mxu0 0.0
    %v2353 = vand.u32 %v126, 4294901760
    %2354 = vmatmul.mubr.f32.gmra.mrb[0].mxu0 %v2353
    %v2355 = vpop.f32.mrb[0].mxu0
    %v2356 = vadd.f32 %v2205, %v2355
    %v2357 = vpop.f32.mrb[0].mxu0
    %2358 = vdwg.mxu0
    %2359 = vmatprep.subr.mxu0 0.0
    %v2360 = vand.u32 %v2101, 4294901760
    %v2361 = vsub.f32 %v2101, %v2360
    %2362 = vmatpush1.msra.mxu0 %v2361
    %2363 = vmatprep.subr.mxu0 0.0
    %v2364 = vand.u32 %v2102, 4294901760
    %v2365 = vsub.f32 %v2102, %v2364
    %2366 = vmatpush1.msra.mxu0 %v2365
    %2367 = vmatprep.subr.mxu0 0.0
    %v2368 = vand.u32 %v2103, 4294901760
    %v2369 = vsub.f32 %v2103, %v2368
    %2370 = vmatpush1.msra.mxu0 %v2369
    %2371 = vmatprep.subr.mxu0 0.0
    %v2372 = vand.u32 %v2104, 4294901760
    %v2373 = vsub.f32 %v2104, %v2372
    %2374 = vmatpush1.msra.mxu0 %v2373
    %2375 = vmatprep.subr.mxu0 0.0
    %v2376 = vand.u32 %v2105, 4294901760
    %v2377 = vsub.f32 %v2105, %v2376
    %2378 = vmatpush1.msra.mxu0 %v2377
    %2379 = vmatprep.subr.mxu0 0.0
    %v2380 = vand.u32 %v2106, 4294901760
    %v2381 = vsub.f32 %v2106, %v2380
    %2382 = vmatpush1.msra.mxu0 %v2381
    %2383 = vmatprep.subr.mxu0 0.0
    %v2384 = vand.u32 %v2107, 4294901760
    %v2385 = vsub.f32 %v2107, %v2384
    %2386 = vmatpush1.msra.mxu0 %v2385
    %2387 = vmatprep.subr.mxu0 0.0
    %v2388 = vand.u32 %v2108, 4294901760
    %v2389 = vsub.f32 %v2108, %v2388
    %2390 = vmatpush1.msra.mxu0 %v2389
    %2391 = vmatprep.subr.mxu0 0.0
    %v2392 = vand.u32 %v2109, 4294901760
    %v2393 = vsub.f32 %v2109, %v2392
    %2394 = vmatpush1.msra.mxu0 %v2393
    %2395 = vmatprep.subr.mxu0 0.0
    %v2396 = vand.u32 %v2110, 4294901760
    %v2397 = vsub.f32 %v2110, %v2396
    %2398 = vmatpush1.msra.mxu0 %v2397
    %2399 = vmatprep.subr.mxu0 0.0
    %v2400 = vand.u32 %v2111, 4294901760
    %v2401 = vsub.f32 %v2111, %v2400
    %2402 = vmatpush1.msra.mxu0 %v2401
    %2403 = vmatprep.subr.mxu0 0.0
    %v2404 = vand.u32 %v2112, 4294901760
    %v2405 = vsub.f32 %v2112, %v2404
    %2406 = vmatpush1.msra.mxu0 %v2405
    %2407 = vmatprep.subr.mxu0 0.0
    %v2408 = vand.u32 %v2113, 4294901760
    %v2409 = vsub.f32 %v2113, %v2408
    %2410 = vmatpush1.msra.mxu0 %v2409
    %2411 = vmatprep.subr.mxu0 0.0
    %v2412 = vand.u32 %v2114, 4294901760
    %v2413 = vsub.f32 %v2114, %v2412
    %2414 = vmatpush1.msra.mxu0 %v2413
    %2415 = vmatprep.subr.mxu0 0.0
    %v2416 = vand.u32 %v2115, 4294901760
    %v2417 = vsub.f32 %v2115, %v2416
    %2418 = vmatpush1.msra.mxu0 %v2417
    %2419 = vmatprep.subr.mxu0 0.0
    %v2420 = vand.u32 %v2116, 4294901760
    %v2421 = vsub.f32 %v2116, %v2420
    %2422 = vmatpush1.msra.mxu0 %v2421
    %2423 = vmatprep.subr.mxu0 0.0
    %2424 = vmatpush1.msra.mxu0 0.0
    %2425 = vmatprep.subr.mxu0 0.0
    %2426 = vmatpush1.msra.mxu0 0.0
    %2427 = vmatprep.subr.mxu0 0.0
    %2428 = vmatpush1.msra.mxu0 0.0
    %2429 = vmatprep.subr.mxu0 0.0
    %2430 = vmatpush1.msra.mxu0 0.0
    %2431 = vmatprep.subr.mxu0 0.0
    %2432 = vmatpush1.msra.mxu0 0.0
    %2433 = vmatprep.subr.mxu0 0.0
    %2434 = vmatpush1.msra.mxu0 0.0
    %2435 = vmatprep.subr.mxu0 0.0
    %2436 = vmatpush1.msra.mxu0 0.0
    %2437 = vmatprep.subr.mxu0 0.0
    %2438 = vmatpush1.msra.mxu0 0.0
    %2439 = vmatprep.subr.mxu0 0.0
    %2440 = vmatpush1.msra.mxu0 0.0
    %2441 = vmatprep.subr.mxu0 0.0
    %2442 = vmatpush1.msra.mxu0 0.0
    %2443 = vmatprep.subr.mxu0 0.0
    %2444 = vmatpush1.msra.mxu0 0.0
    %2445 = vmatprep.subr.mxu0 0.0
    %2446 = vmatpush1.msra.mxu0 0.0
    %2447 = vmatprep.subr.mxu0 0.0
    %2448 = vmatpush1.msra.mxu0 0.0
    %2449 = vmatprep.subr.mxu0 0.0
    %2450 = vmatpush1.msra.mxu0 0.0
    %2451 = vmatprep.subr.mxu0 0.0
    %2452 = vmatpush1.msra.mxu0 0.0
    %2453 = vmatprep.subr.mxu0 0.0
    %2454 = vmatpush1.msra.mxu0 0.0
    %2455 = vmatprep.mubr.f32.mxu0 0.0
    %v2456 = vand.u32 %v126, 4294901760
    %v2457 = vsub.f32 %v126, %v2456
    %2458 = vmatmul.mubr.f32.gmra.mrb[0].mxu0 %v2457
    %v2459 = vpop.f32.mrb[0].mxu0
    %v2460 = vadd.f32 %v2356, %v2459
    %v2461 = vpop.f32.mrb[0].mxu0
    %2462 = vdwg.mxu0
    %2463 = vmatprep.subr.mxu0 0.0
    %v2464 = vand.u32 %v2101, 4294901760
    %2465 = vmatpush1.msra.mxu0 %v2464
    %2466 = vmatprep.subr.mxu0 0.0
    %v2467 = vand.u32 %v2102, 4294901760
    %2468 = vmatpush1.msra.mxu0 %v2467
    %2469 = vmatprep.subr.mxu0 0.0
    %v2470 = vand.u32 %v2103, 4294901760
    %2471 = vmatpush1.msra.mxu0 %v2470
    %2472 = vmatprep.subr.mxu0 0.0
    %v2473 = vand.u32 %v2104, 4294901760
    %2474 = vmatpush1.msra.mxu0 %v2473
    %2475 = vmatprep.subr.mxu0 0.0
    %v2476 = vand.u32 %v2105, 4294901760
    %2477 = vmatpush1.msra.mxu0 %v2476
    %2478 = vmatprep.subr.mxu0 0.0
    %v2479 = vand.u32 %v2106, 4294901760
    %2480 = vmatpush1.msra.mxu0 %v2479
    %2481 = vmatprep.subr.mxu0 0.0
    %v2482 = vand.u32 %v2107, 4294901760
    %2483 = vmatpush1.msra.mxu0 %v2482
    %2484 = vmatprep.subr.mxu0 0.0
    %v2485 = vand.u32 %v2108, 4294901760
    %2486 = vmatpush1.msra.mxu0 %v2485
    %2487 = vmatprep.subr.mxu0 0.0
    %v2488 = vand.u32 %v2109, 4294901760
    %2489 = vmatpush1.msra.mxu0 %v2488
    %2490 = vmatprep.subr.mxu0 0.0
    %v2491 = vand.u32 %v2110, 4294901760
    %2492 = vmatpush1.msra.mxu0 %v2491
    %2493 = vmatprep.subr.mxu0 0.0
    %v2494 = vand.u32 %v2111, 4294901760
    %2495 = vmatpush1.msra.mxu0 %v2494
    %2496 = vmatprep.subr.mxu0 0.0
    %v2497 = vand.u32 %v2112, 4294901760
    %2498 = vmatpush1.msra.mxu0 %v2497
    %2499 = vmatprep.subr.mxu0 0.0
    %v2500 = vand.u32 %v2113, 4294901760
    %2501 = vmatpush1.msra.mxu0 %v2500
    %2502 = vmatprep.subr.mxu0 0.0
    %v2503 = vand.u32 %v2114, 4294901760
    %2504 = vmatpush1.msra.mxu0 %v2503
    %2505 = vmatprep.subr.mxu0 0.0
    %v2506 = vand.u32 %v2115, 4294901760
    %2507 = vmatpush1.msra.mxu0 %v2506
    %2508 = vmatprep.subr.mxu0 0.0
    %v2509 = vand.u32 %v2116, 4294901760
    %2510 = vmatpush1.msra.mxu0 %v2509
    %2511 = vmatprep.subr.mxu0 0.0
    %2512 = vmatpush1.msra.mxu0 0.0
    %2513 = vmatprep.subr.mxu0 0.0
    %2514 = vmatpush1.msra.mxu0 0.0
    %2515 = vmatprep.subr.mxu0 0.0
    %2516 = vmatpush1.msra.mxu0 0.0
    %2517 = vmatprep.subr.mxu0 0.0
    %2518 = vmatpush1.msra.mxu0 0.0
    %2519 = vmatprep.subr.mxu0 0.0
    %2520 = vmatpush1.msra.mxu0 0.0
    %2521 = vmatprep.subr.mxu0 0.0
    %2522 = vmatpush1.msra.mxu0 0.0
    %2523 = vmatprep.subr.mxu0 0.0
    %2524 = vmatpush1.msra.mxu0 0.0
    %2525 = vmatprep.subr.mxu0 0.0
    %2526 = vmatpush1.msra.mxu0 0.0
    %2527 = vmatprep.subr.mxu0 0.0
    %2528 = vmatpush1.msra.mxu0 0.0
    %2529 = vmatprep.subr.mxu0 0.0
    %2530 = vmatpush1.msra.mxu0 0.0
    %2531 = vmatprep.subr.mxu0 0.0
    %2532 = vmatpush1.msra.mxu0 0.0
    %2533 = vmatprep.subr.mxu0 0.0
    %2534 = vmatpush1.msra.mxu0 0.0
    %2535 = vmatprep.subr.mxu0 0.0
    %2536 = vmatpush1.msra.mxu0 0.0
    %2537 = vmatprep.subr.mxu0 0.0
    %2538 = vmatpush1.msra.mxu0 0.0
    %2539 = vmatprep.subr.mxu0 0.0
    %2540 = vmatpush1.msra.mxu0 0.0
    %2541 = vmatprep.subr.mxu0 0.0
    %2542 = vmatpush1.msra.mxu0 0.0
    %2543 = vmatprep.mubr.f32.mxu0 0.0
    %v2544 = vand.u32 %v126, 4294901760
    %v2545 = vsub.f32 %v126, %v2544
    %v2546 = vand.u32 %v2545, 4294901760
    %2547 = vmatmul.mubr.f32.gmra.mrb[0].mxu0 %v2546
    %v2548 = vpop.f32.mrb[0].mxu0
    %v2549 = vadd.f32 %v2460, %v2548
    %v2550 = vpop.f32.mrb[0].mxu0
    %2551 = vdwg.mxu0
    %2552 = vmatprep.subr.mxu0 0.0
    %v2553 = vand.u32 %v2101, 4294901760
    %v2554 = vsub.f32 %v2101, %v2553
    %v2555 = vand.u32 %v2554, 4294901760
    %2556 = vmatpush1.msra.mxu0 %v2555
    %2557 = vmatprep.subr.mxu0 0.0
    %v2558 = vand.u32 %v2102, 4294901760
    %v2559 = vsub.f32 %v2102, %v2558
    %v2560 = vand.u32 %v2559, 4294901760
    %2561 = vmatpush1.msra.mxu0 %v2560
    %2562 = vmatprep.subr.mxu0 0.0
    %v2563 = vand.u32 %v2103, 4294901760
    %v2564 = vsub.f32 %v2103, %v2563
    %v2565 = vand.u32 %v2564, 4294901760
    %2566 = vmatpush1.msra.mxu0 %v2565
    %2567 = vmatprep.subr.mxu0 0.0
    %v2568 = vand.u32 %v2104, 4294901760
    %v2569 = vsub.f32 %v2104, %v2568
    %v2570 = vand.u32 %v2569, 4294901760
    %2571 = vmatpush1.msra.mxu0 %v2570
    %2572 = vmatprep.subr.mxu0 0.0
    %v2573 = vand.u32 %v2105, 4294901760
    %v2574 = vsub.f32 %v2105, %v2573
    %v2575 = vand.u32 %v2574, 4294901760
    %2576 = vmatpush1.msra.mxu0 %v2575
    %2577 = vmatprep.subr.mxu0 0.0
    %v2578 = vand.u32 %v2106, 4294901760
    %v2579 = vsub.f32 %v2106, %v2578
    %v2580 = vand.u32 %v2579, 4294901760
    %2581 = vmatpush1.msra.mxu0 %v2580
    %2582 = vmatprep.subr.mxu0 0.0
    %v2583 = vand.u32 %v2107, 4294901760
    %v2584 = vsub.f32 %v2107, %v2583
    %v2585 = vand.u32 %v2584, 4294901760
    %2586 = vmatpush1.msra.mxu0 %v2585
    %2587 = vmatprep.subr.mxu0 0.0
    %v2588 = vand.u32 %v2108, 4294901760
    %v2589 = vsub.f32 %v2108, %v2588
    %v2590 = vand.u32 %v2589, 4294901760
    %2591 = vmatpush1.msra.mxu0 %v2590
    %2592 = vmatprep.subr.mxu0 0.0
    %v2593 = vand.u32 %v2109, 4294901760
    %v2594 = vsub.f32 %v2109, %v2593
    %v2595 = vand.u32 %v2594, 4294901760
    %2596 = vmatpush1.msra.mxu0 %v2595
    %2597 = vmatprep.subr.mxu0 0.0
    %v2598 = vand.u32 %v2110, 4294901760
    %v2599 = vsub.f32 %v2110, %v2598
    %v2600 = vand.u32 %v2599, 4294901760
    %2601 = vmatpush1.msra.mxu0 %v2600
    %2602 = vmatprep.subr.mxu0 0.0
    %v2603 = vand.u32 %v2111, 4294901760
    %v2604 = vsub.f32 %v2111, %v2603
    %v2605 = vand.u32 %v2604, 4294901760
    %2606 = vmatpush1.msra.mxu0 %v2605
    %2607 = vmatprep.subr.mxu0 0.0
    %v2608 = vand.u32 %v2112, 4294901760
    %v2609 = vsub.f32 %v2112, %v2608
    %v2610 = vand.u32 %v2609, 4294901760
    %2611 = vmatpush1.msra.mxu0 %v2610
    %2612 = vmatprep.subr.mxu0 0.0
    %v2613 = vand.u32 %v2113, 4294901760
    %v2614 = vsub.f32 %v2113, %v2613
    %v2615 = vand.u32 %v2614, 4294901760
    %2616 = vmatpush1.msra.mxu0 %v2615
    %2617 = vmatprep.subr.mxu0 0.0
    %v2618 = vand.u32 %v2114, 4294901760
    %v2619 = vsub.f32 %v2114, %v2618
    %v2620 = vand.u32 %v2619, 4294901760
    %2621 = vmatpush1.msra.mxu0 %v2620
    %2622 = vmatprep.subr.mxu0 0.0
    %v2623 = vand.u32 %v2115, 4294901760
    %v2624 = vsub.f32 %v2115, %v2623
    %v2625 = vand.u32 %v2624, 4294901760
    %2626 = vmatpush1.msra.mxu0 %v2625
    %2627 = vmatprep.subr.mxu0 0.0
    %v2628 = vand.u32 %v2116, 4294901760
    %v2629 = vsub.f32 %v2116, %v2628
    %v2630 = vand.u32 %v2629, 4294901760
    %2631 = vmatpush1.msra.mxu0 %v2630
    %2632 = vmatprep.subr.mxu0 0.0
    %2633 = vmatpush1.msra.mxu0 0.0
    %2634 = vmatprep.subr.mxu0 0.0
    %2635 = vmatpush1.msra.mxu0 0.0
    %2636 = vmatprep.subr.mxu0 0.0
    %2637 = vmatpush1.msra.mxu0 0.0
    %2638 = vmatprep.subr.mxu0 0.0
    %2639 = vmatpush1.msra.mxu0 0.0
    %2640 = vmatprep.subr.mxu0 0.0
    %2641 = vmatpush1.msra.mxu0 0.0
    %2642 = vmatprep.subr.mxu0 0.0
    %2643 = vmatpush1.msra.mxu0 0.0
    %2644 = vmatprep.subr.mxu0 0.0
    %2645 = vmatpush1.msra.mxu0 0.0
    %2646 = vmatprep.subr.mxu0 0.0
    %2647 = vmatpush1.msra.mxu0 0.0
    %2648 = vmatprep.subr.mxu0 0.0
    %2649 = vmatpush1.msra.mxu0 0.0
    %2650 = vmatprep.subr.mxu0 0.0
    %2651 = vmatpush1.msra.mxu0 0.0
    %2652 = vmatprep.subr.mxu0 0.0
    %2653 = vmatpush1.msra.mxu0 0.0
    %2654 = vmatprep.subr.mxu0 0.0
    %2655 = vmatpush1.msra.mxu0 0.0
    %2656 = vmatprep.subr.mxu0 0.0
    %2657 = vmatpush1.msra.mxu0 0.0
    %2658 = vmatprep.subr.mxu0 0.0
    %2659 = vmatpush1.msra.mxu0 0.0
    %2660 = vmatprep.subr.mxu0 0.0
    %2661 = vmatpush1.msra.mxu0 0.0
    %2662 = vmatprep.subr.mxu0 0.0
    %2663 = vmatpush1.msra.mxu0 0.0
    %2664 = vmatprep.mubr.f32.mxu0 0.0
    %v2665 = vand.u32 %v126, 4294901760
    %2666 = vmatmul.mubr.f32.gmra.mrb[0].mxu0 %v2665
    %v2667 = vpop.f32.mrb[0].mxu0
    %v2668 = vadd.f32 %v2549, %v2667
    %v2669 = vpop.f32.mrb[0].mxu0
    %2670 = vdwg.mxu0
    %2671 = vmatprep.subr.mxu0 0.0
    %v2672 = vand.u32 %v2101, 4294901760
    %2673 = vmatpush1.msra.mxu0 %v2672
    %2674 = vmatprep.subr.mxu0 0.0
    %v2675 = vand.u32 %v2102, 4294901760
    %2676 = vmatpush1.msra.mxu0 %v2675
    %2677 = vmatprep.subr.mxu0 0.0
    %v2678 = vand.u32 %v2103, 4294901760
    %2679 = vmatpush1.msra.mxu0 %v2678
    %2680 = vmatprep.subr.mxu0 0.0
    %v2681 = vand.u32 %v2104, 4294901760
    %2682 = vmatpush1.msra.mxu0 %v2681
    %2683 = vmatprep.subr.mxu0 0.0
    %v2684 = vand.u32 %v2105, 4294901760
    %2685 = vmatpush1.msra.mxu0 %v2684
    %2686 = vmatprep.subr.mxu0 0.0
    %v2687 = vand.u32 %v2106, 4294901760
    %2688 = vmatpush1.msra.mxu0 %v2687
    %2689 = vmatprep.subr.mxu0 0.0
    %v2690 = vand.u32 %v2107, 4294901760
    %2691 = vmatpush1.msra.mxu0 %v2690
    %2692 = vmatprep.subr.mxu0 0.0
    %v2693 = vand.u32 %v2108, 4294901760
    %2694 = vmatpush1.msra.mxu0 %v2693
    %2695 = vmatprep.subr.mxu0 0.0
    %v2696 = vand.u32 %v2109, 4294901760
    %2697 = vmatpush1.msra.mxu0 %v2696
    %2698 = vmatprep.subr.mxu0 0.0
    %v2699 = vand.u32 %v2110, 4294901760
    %2700 = vmatpush1.msra.mxu0 %v2699
    %2701 = vmatprep.subr.mxu0 0.0
    %v2702 = vand.u32 %v2111, 4294901760
    %2703 = vmatpush1.msra.mxu0 %v2702
    %2704 = vmatprep.subr.mxu0 0.0
    %v2705 = vand.u32 %v2112, 4294901760
    %2706 = vmatpush1.msra.mxu0 %v2705
    %2707 = vmatprep.subr.mxu0 0.0
    %v2708 = vand.u32 %v2113, 4294901760
    %2709 = vmatpush1.msra.mxu0 %v2708
    %2710 = vmatprep.subr.mxu0 0.0
    %v2711 = vand.u32 %v2114, 4294901760
    %2712 = vmatpush1.msra.mxu0 %v2711
    %2713 = vmatprep.subr.mxu0 0.0
    %v2714 = vand.u32 %v2115, 4294901760
    %2715 = vmatpush1.msra.mxu0 %v2714
    %2716 = vmatprep.subr.mxu0 0.0
    %v2717 = vand.u32 %v2116, 4294901760
    %2718 = vmatpush1.msra.mxu0 %v2717
    %2719 = vmatprep.subr.mxu0 0.0
    %2720 = vmatpush1.msra.mxu0 0.0
    %2721 = vmatprep.subr.mxu0 0.0
    %2722 = vmatpush1.msra.mxu0 0.0
    %2723 = vmatprep.subr.mxu0 0.0
    %2724 = vmatpush1.msra.mxu0 0.0
    %2725 = vmatprep.subr.mxu0 0.0
    %2726 = vmatpush1.msra.mxu0 0.0
    %2727 = vmatprep.subr.mxu0 0.0
    %2728 = vmatpush1.msra.mxu0 0.0
    %2729 = vmatprep.subr.mxu0 0.0
    %2730 = vmatpush1.msra.mxu0 0.0
    %2731 = vmatprep.subr.mxu0 0.0
    %2732 = vmatpush1.msra.mxu0 0.0
    %2733 = vmatprep.subr.mxu0 0.0
    %2734 = vmatpush1.msra.mxu0 0.0
    %2735 = vmatprep.subr.mxu0 0.0
    %2736 = vmatpush1.msra.mxu0 0.0
    %2737 = vmatprep.subr.mxu0 0.0
    %2738 = vmatpush1.msra.mxu0 0.0
    %2739 = vmatprep.subr.mxu0 0.0
    %2740 = vmatpush1.msra.mxu0 0.0
    %2741 = vmatprep.subr.mxu0 0.0
    %2742 = vmatpush1.msra.mxu0 0.0
    %2743 = vmatprep.subr.mxu0 0.0
    %2744 = vmatpush1.msra.mxu0 0.0
    %2745 = vmatprep.subr.mxu0 0.0
    %2746 = vmatpush1.msra.mxu0 0.0
    %2747 = vmatprep.subr.mxu0 0.0
    %2748 = vmatpush1.msra.mxu0 0.0
    %2749 = vmatprep.subr.mxu0 0.0
    %2750 = vmatpush1.msra.mxu0 0.0
    %2751 = vmatprep.mubr.f32.mxu0 0.0
    %v2752 = vand.u32 %v126, 4294901760
    %2753 = vmatmul.mubr.f32.gmra.mrb[0].mxu0 %v2752
    %v2754 = vpop.f32.mrb[0].mxu0
    %v2755 = vadd.f32 %v2668, %v2754
    %v2756 = vpop.f32.mrb[0].mxu0
    %2757 = vdwg.mxu0
    %v2758 = vmul.f32 %v781, %v1439
    %v2759 = vmul.f32 %v2097, %v2755
    %v2760 = vmul.f32 %v2758, %v2759
    %v2761 = vadd.f32 %v2760, 1.0
    %v2762 = vmul.f32 %v2761, 0.5
    %v2763 = vmul.f32 %v2762, 0.5
    %v2764 = vtanh.pop %v2763
    %v2765 = vmul.f32 %v2764, 0.5
    %v2766 = vadd.f32 %v2765, 0.5
    %vm2767 = vcmask 261120
    %2768 = vst.msk [vmem:[#allocation2] sm:$0xff] %vm2767, %v2766
    // Predicated region
    $region14: #{tpu_custom_call.1} parent=1 // pred_check
      _
    $region15: #{tpu_custom_call.1} parent=1 // pred_check_branch
      %2770 = sbr.rel (0) target = $region17
    $region16: #{tpu_custom_call.1} parent=1 // pred_region
      %s2772 = ssub.s32 128, 128
      %2773 = vsyncadd [#allocation3], %s2772
      %s2775 = sshll.u32 [#allocation2], 4
      %s2776 = int_to_ptr.vmem [resolvable:$true] %s2775
      %2778 = dma.vmem_to_hbm [thread:$0]  %s2776, 128, %s3, [#allocation3]
    $region17: #{tpu_custom_call.1} parent=1 // pred_fallthru
      _
    // Predicated region
    $region18: #{tpu_custom_call.1} parent=1 // pred_check
      _
    $region19: #{tpu_custom_call.1} parent=1 // pred_check_branch
      %2780 = sbr.rel (0) target = $region21
    $region20: #{tpu_custom_call.1} parent=1 // pred_region
      %2781 = dma.done [#allocation3], 128
    $region21: #{tpu_custom_call.1} parent=1 // pred_fallthru
      _
    %2782 = vsyncpa [#allocation3], 1

</llo_original>
